<compile_context>
chip_gen: v7x
topology: tpu7x:2x2x1
jax: 0.10.0
libtpu: 0.0.40
codegen_flags: <defaults>
</compile_context>

<pallas_src>
import jax
import jax.numpy as jnp
from jax.experimental import pallas as pl
from jax.experimental.pallas import tpu as pltpu

VMEM = pltpu.MemorySpace.VMEM

# Padded (lane-dense) feature dims.
T_PAD = 128      # tem_size 60  -> 128 (fc4 / graph-hop width)
H1_PAD = 128     # fc1 out 100  -> 128
H2_PAD = 256     # fc2/fc3 200  -> 256
OUT_PAD = 128    # conv-tail 6  -> 128 (lane-dense store; wrapper slices [:6])


# ---------------- fused forward kernel ----------------
def _fused_kernel(xw_ref, xd_ref, xr_ref,
                  w1w_ref, w1d_ref, w1r_ref, b1_ref,
                  w2_ref, b2_ref, w3_ref, b3_ref, w4_ref, b4_ref,
                  abig_ref, wsum_ref, bsum_ref,
                  y1_ref, ff_ref, out_ref):
    f32 = jnp.float32
    bf16 = jnp.bfloat16

    # fc1, split along the (week|day|recent) concat axis so the raw inputs are
    # consumed directly (no wrapper-side concat/pad materialization).
    h = (jnp.dot(xw_ref[...].astype(bf16), w1w_ref[...], preferred_element_type=f32)
         + jnp.dot(xd_ref[...].astype(bf16), w1d_ref[...], preferred_element_type=f32)
         + jnp.dot(xr_ref[...].astype(bf16), w1r_ref[...], preferred_element_type=f32))
    h = jnp.maximum(h + b1_ref[...], 0.0)

    # fc2..fc4 with ReLU after every layer (reference: aa = relu(fc4(...))).
    h = jnp.maximum(
        jnp.dot(h.astype(bf16), w2_ref[...], preferred_element_type=f32)
        + b2_ref[...], 0.0)
    h = jnp.maximum(
        jnp.dot(h.astype(bf16), w3_ref[...], preferred_element_type=f32)
        + b3_ref[...], 0.0)
    aa = jnp.maximum(
        jnp.dot(h.astype(bf16), w4_ref[...], preferred_element_type=f32)
        + b4_ref[...], 0.0)                        # (M, T_PAD) f32

    # TODO(synk): PHYSICS_LAYER / PHYSICS_DECODER are not defined in model.py;
    # they are stood in with ReLU graph convolutions over `supports`.
    # Two stacked graph hops against the block-diagonal adjacency
    # kron(I_{B*C}, A): one (M,M)@(M,T_PAD) matmul each, kept in registers.
    A = abig_ref[...]                              # (M, M) bf16
    y1 = jnp.maximum(jnp.dot(A, aa.astype(bf16), preferred_element_type=f32), 0.0)
    ff = jnp.maximum(jnp.dot(A, y1.astype(bf16), preferred_element_type=f32), 0.0)

    # Single unmasked full-tile stores (lane-dense width T_PAD).
    y1_ref[...] = y1
    ff_ref[...] = ff

    # conv1..conv4 slice/sum tail as one selector matmul, fed from the
    # in-register ff value (no VMEM store->load round trip).
    out_ref[...] = (
        jnp.dot(ff.astype(bf16), wsum_ref[...], preferred_element_type=f32)
        + bsum_ref[...])


# ---------------- full HSPGCN forward ----------------
def hspgcn_forward(params, x_w, x_w_mask, x_d, x_d_mask, x_r, x_r_mask,
                   train_t_mask, supports):
    # NOTE: the reference forward never uses self.bn, conv5..conv10 or the
    # mask inputs; they are accepted but ignored here as well.
    del x_w_mask, x_d_mask, x_r_mask, train_t_mask

    B, C, N, week = x_w.shape
    day = x_d.shape[-1]
    recent = x_r.shape[-1]
    T = week + day + recent
    assert C == 1, "Conv2d(1,1,(1,1)) tail in the reference requires C == 1"
    BC = B * C
    M = BC * N

    # Free contiguous reshapes; no concat or pad materialized in HBM.
    xw2d = x_w.reshape(M, week).astype(jnp.float32)
    xd2d = x_d.reshape(M, day).astype(jnp.float32)
    xr2d = x_r.reshape(M, recent).astype(jnp.float32)

    A = supports.astype(jnp.float32)
    # Block-diagonal adjacency: one big matmul per graph hop instead of a
    # Python-unrolled per-batch loop of tiny matmuls + sliced stores.
    a_big = jnp.kron(jnp.eye(BC, dtype=jnp.float32), A).astype(jnp.bfloat16)

    (w1w, w1d, w1r, b1, w2, b2, w3, b3, w4, b4) = params["mlp"]
    wsum = params["wsum"]
    bsum = params["bsum_row"]

    y1p, ffp, outp = pl.pallas_call(
        _fused_kernel,
        out_shape=(
            jax.ShapeDtypeStruct((M, T_PAD), jnp.float32),    # y1 (padded)
            jax.ShapeDtypeStruct((M, T_PAD), jnp.float32),    # ff (padded)
            jax.ShapeDtypeStruct((M, OUT_PAD), jnp.float32),  # conv-tail out
        ),
        in_specs=[pl.BlockSpec(memory_space=VMEM)] * 16,
        out_specs=(pl.BlockSpec(memory_space=VMEM),) * 3,
    )(xw2d, xd2d, xr2d, w1w, w1d, w1r, b1, w2, b2, w3, b3, w4, b4,
      a_big, wsum, bsum)

    y1 = y1p[:, :T].reshape(B, C, N, T)
    ff = ffp[:, :T].reshape(B, C, N, T)
    out = outp[:, :6].reshape(B, N, 6)   # C == 1 -> squeeze(1) in the conv tail
    d_adj = A
    return out, d_adj, ff, y1


# ---------------- deterministic parameter init (pre-padded, bf16 weights) ---
def init_params(key, week, day, recent):
    tem_size = week + day + recent
    ks = jax.random.split(key, 6)

    def lin(k, din, dout):
        kw, kb = jax.random.split(k)
        scale = 1.0 / jnp.sqrt(float(din))
        w = jax.random.uniform(kw, (din, dout), jnp.float32, -scale, scale)
        b = jax.random.uniform(kb, (1, dout), jnp.float32, -scale, scale)
        return w, b

    def pad(a, shape):
        z = jnp.zeros(shape, jnp.float32)
        return z.at[:a.shape[0], :a.shape[1]].set(a)

    w1, b1 = lin(ks[0], tem_size, 100)
    w2, b2 = lin(ks[1], 100, 200)
    w3, b3 = lin(ks[2], 200, 200)
    w4, b4 = lin(ks[3], 200, tem_size)

    # fc1 weight is row-split along the (week|day|recent) concat axis.
    # Weights feeding the MXU are stored bf16; biases stay f32 (VPU path).
    w1w = pad(w1[:week], (week, H1_PAD)).astype(jnp.bfloat16)
    w1d = pad(w1[week:week + day], (day, H1_PAD)).astype(jnp.bfloat16)
    w1r = pad(w1[week + day:], (recent, H1_PAD)).astype(jnp.bfloat16)
    b1p = pad(b1, (1, H1_PAD))
    w2p = pad(w2, (H1_PAD, H2_PAD)).astype(jnp.bfloat16)
    b2p = pad(b2, (1, H2_PAD))
    w3p = pad(w3, (H2_PAD, H2_PAD)).astype(jnp.bfloat16)
    b3p = pad(b3, (1, H2_PAD))
    w4p = pad(w4, (H2_PAD, T_PAD)).astype(jnp.bfloat16)
    b4p = pad(b4, (1, T_PAD))

    # conv1..conv4 are Conv2d(1,1,(1,1)) -> a single scalar weight + bias each.
    # Slice group g -> conv: {0,3,6}->conv1, {1,4,7}->conv2, {2,5,8}->conv3, {9}->conv4.
    cw = jax.random.uniform(ks[4], (4,), jnp.float32, -1.0, 1.0)
    cb = jax.random.uniform(ks[5], (4,), jnp.float32, -1.0, 1.0)
    group_to_conv = jnp.array([0, 1, 2, 0, 1, 2, 0, 1, 2, 3], dtype=jnp.int32)
    wg = cw[group_to_conv]                      # (10,) per-slice scalar weight
    bg = cb[group_to_conv]                      # (10,) per-slice scalar bias

    # Selector matrix: out[:, j] = sum_g wg[g] * x[:, 6*g + j]
    #   => Wsum[6*g + j, j] = wg[g]; bias is the sum of the 10 slice biases.
    n_groups = tem_size // 6
    rows = jnp.arange(n_groups * 6)
    wsum = (jnp.zeros((T_PAD, OUT_PAD), jnp.float32)
            .at[rows, rows % 6].set(wg[rows // 6])).astype(jnp.bfloat16)
    bsum_row = (jnp.zeros((1, OUT_PAD), jnp.float32)
                .at[:, :6].set(jnp.sum(bg)))

    return {
        "mlp": (w1w, w1d, w1r, b1p, w2p, b2p, w3p, b3p, w4p, b4p),
        "wsum": wsum,
        "bsum_row": bsum_row,
    }


if __name__ == "__main__":
    key = jax.random.PRNGKey(0)
    B, C, N = 2, 1, 16
    week, day, recent = 24, 24, 12
    tem_size = week + day + recent        # 60 = 10 slices * 6 (matches x[..., 54:60])

    kx = jax.random.split(key, 6)
    x_w = jax.random.normal(kx[0], (B, C, N, week), jnp.float32)
    x_d = jax.random.normal(kx[1], (B, C, N, day), jnp.float32)
    x_r = jax.random.normal(kx[2], (B, C, N, recent), jnp.float32)
    x_w_mask = jnp.ones_like(x_w)
    x_d_mask = jnp.ones_like(x_d)
    x_r_mask = jnp.ones_like(x_r)
    train_t_mask = jnp.ones((B, C, N, tem_size), jnp.float32)
    supports = jax.nn.softmax(
        jax.random.normal(kx[3], (N, N), jnp.float32), axis=-1)

    params = init_params(kx[4], week, day, recent)

    out, d_adj, ff, y1 = jax.jit(hspgcn_forward)(
        params, x_w, x_w_mask, x_d, x_d_mask, x_r, x_r_mask,
        train_t_mask, supports)
    jax.block_until_ready((out, d_adj, ff, y1))

    assert out.shape == (B, N, 6), out.shape
    assert d_adj.shape == (N, N), d_adj.shape
    assert y1.shape == (B, C, N, tem_size), y1.shape
    assert ff.shape == (B, C, N, tem_size), ff.shape
    assert bool(jnp.all(jnp.isfinite(out)))
    print("KERNEL_OK")
</pallas_src>

<mosaic_0001>
module attributes {stable_mosaic.version = 11 : i64} {
  func.func @_fused_kernel(%arg0: memref<32x24xf32, #tpu.memory_space<vmem>>, %arg1: memref<32x24xf32, #tpu.memory_space<vmem>>, %arg2: memref<32x12xf32, #tpu.memory_space<vmem>>, %arg3: memref<24x128xbf16, #tpu.memory_space<vmem>>, %arg4: memref<24x128xbf16, #tpu.memory_space<vmem>>, %arg5: memref<12x128xbf16, #tpu.memory_space<vmem>>, %arg6: memref<1x128xf32, #tpu.memory_space<vmem>>, %arg7: memref<128x256xbf16, #tpu.memory_space<vmem>>, %arg8: memref<1x256xf32, #tpu.memory_space<vmem>>, %arg9: memref<256x256xbf16, #tpu.memory_space<vmem>>, %arg10: memref<1x256xf32, #tpu.memory_space<vmem>>, %arg11: memref<256x128xbf16, #tpu.memory_space<vmem>>, %arg12: memref<1x128xf32, #tpu.memory_space<vmem>>, %arg13: memref<32x32xbf16, #tpu.memory_space<vmem>>, %arg14: memref<128x128xbf16, #tpu.memory_space<vmem>>, %arg15: memref<1x128xf32, #tpu.memory_space<vmem>>, %arg16: memref<32x128xf32, #tpu.memory_space<vmem>>, %arg17: memref<32x128xf32, #tpu.memory_space<vmem>>, %arg18: memref<32x128xf32, #tpu.memory_space<vmem>>) attributes {dimension_semantics = [], scalar_prefetch = 0 : i64, scratch_operands = 0 : i64, tpu.core_type = #tpu.core_type<tc>} {
    %c0 = arith.constant 0 : index
    %c0_0 = arith.constant 0 : index
    %0 = vector.load %arg0[%c0, %c0_0] : memref<32x24xf32, #tpu.memory_space<vmem>>, vector<32x24xf32>
    %1 = arith.truncf %0 : vector<32x24xf32> to vector<32x24xbf16>
    %c0_1 = arith.constant 0 : index
    %c0_2 = arith.constant 0 : index
    %2 = vector.load %arg3[%c0_1, %c0_2] : memref<24x128xbf16, #tpu.memory_space<vmem>>, vector<24x128xbf16>
    %cst = arith.constant dense<0.000000e+00> : vector<32x128xf32>
    %3 = tpu.matmul %1, %2, %cst {dimension_numbers = #tpu.dot_dimension_numbers<[1], [0], [0], [1], [0, 0, 1, 1], [], []>} : vector<32x24xbf16>, vector<24x128xbf16>, vector<32x128xf32> -> vector<32x128xf32>
    %c0_3 = arith.constant 0 : index
    %c0_4 = arith.constant 0 : index
    %4 = vector.load %arg1[%c0_3, %c0_4] : memref<32x24xf32, #tpu.memory_space<vmem>>, vector<32x24xf32>
    %5 = arith.truncf %4 : vector<32x24xf32> to vector<32x24xbf16>
    %c0_5 = arith.constant 0 : index
    %c0_6 = arith.constant 0 : index
    %6 = vector.load %arg4[%c0_5, %c0_6] : memref<24x128xbf16, #tpu.memory_space<vmem>>, vector<24x128xbf16>
    %cst_7 = arith.constant dense<0.000000e+00> : vector<32x128xf32>
    %7 = tpu.matmul %5, %6, %cst_7 {dimension_numbers = #tpu.dot_dimension_numbers<[1], [0], [0], [1], [0, 0, 1, 1], [], []>} : vector<32x24xbf16>, vector<24x128xbf16>, vector<32x128xf32> -> vector<32x128xf32>
    %8 = arith.addf %3, %7 : vector<32x128xf32>
    %c0_8 = arith.constant 0 : index
    %c0_9 = arith.constant 0 : index
    %9 = vector.load %arg2[%c0_8, %c0_9] : memref<32x12xf32, #tpu.memory_space<vmem>>, vector<32x12xf32>
    %10 = arith.truncf %9 : vector<32x12xf32> to vector<32x12xbf16>
    %c0_10 = arith.constant 0 : index
    %c0_11 = arith.constant 0 : index
    %11 = vector.load %arg5[%c0_10, %c0_11] : memref<12x128xbf16, #tpu.memory_space<vmem>>, vector<12x128xbf16>
    %cst_12 = arith.constant dense<0.000000e+00> : vector<32x128xf32>
    %12 = tpu.matmul %10, %11, %cst_12 {dimension_numbers = #tpu.dot_dimension_numbers<[1], [0], [0], [1], [0, 0, 1, 1], [], []>} : vector<32x12xbf16>, vector<12x128xbf16>, vector<32x128xf32> -> vector<32x128xf32>
    %13 = arith.addf %8, %12 : vector<32x128xf32>
    %c0_13 = arith.constant 0 : index
    %c0_14 = arith.constant 0 : index
    %14 = vector.load %arg6[%c0_13, %c0_14] : memref<1x128xf32, #tpu.memory_space<vmem>>, vector<1x128xf32>
    %15 = vector.broadcast %14 : vector<1x128xf32> to vector<32x128xf32>
    %16 = arith.addf %13, %15 : vector<32x128xf32>
    %cst_15 = arith.constant 0.000000e+00 : f32
    %17 = vector.broadcast %cst_15 : f32 to vector<32x128xf32>
    %18 = arith.maximumf %16, %17 : vector<32x128xf32>
    %19 = arith.truncf %18 : vector<32x128xf32> to vector<32x128xbf16>
    %c0_16 = arith.constant 0 : index
    %c0_17 = arith.constant 0 : index
    %20 = vector.load %arg7[%c0_16, %c0_17] : memref<128x256xbf16, #tpu.memory_space<vmem>>, vector<128x256xbf16>
    %cst_18 = arith.constant dense<0.000000e+00> : vector<32x256xf32>
    %21 = tpu.matmul %19, %20, %cst_18 {dimension_numbers = #tpu.dot_dimension_numbers<[1], [0], [0], [1], [0, 0, 1, 1], [], []>} : vector<32x128xbf16>, vector<128x256xbf16>, vector<32x256xf32> -> vector<32x256xf32>
    %c0_19 = arith.constant 0 : index
    %c0_20 = arith.constant 0 : index
    %22 = vector.load %arg8[%c0_19, %c0_20] : memref<1x256xf32, #tpu.memory_space<vmem>>, vector<1x256xf32>
    %23 = vector.broadcast %22 : vector<1x256xf32> to vector<32x256xf32>
    %24 = arith.addf %21, %23 : vector<32x256xf32>
    %cst_21 = arith.constant 0.000000e+00 : f32
    %25 = vector.broadcast %cst_21 : f32 to vector<32x256xf32>
    %26 = arith.maximumf %24, %25 : vector<32x256xf32>
    %27 = arith.truncf %26 : vector<32x256xf32> to vector<32x256xbf16>
    %c0_22 = arith.constant 0 : index
    %c0_23 = arith.constant 0 : index
    %28 = vector.load %arg9[%c0_22, %c0_23] : memref<256x256xbf16, #tpu.memory_space<vmem>>, vector<256x256xbf16>
    %cst_24 = arith.constant dense<0.000000e+00> : vector<32x256xf32>
    %29 = tpu.matmul %27, %28, %cst_24 {dimension_numbers = #tpu.dot_dimension_numbers<[1], [0], [0], [1], [0, 0, 1, 1], [], []>} : vector<32x256xbf16>, vector<256x256xbf16>, vector<32x256xf32> -> vector<32x256xf32>
    %c0_25 = arith.constant 0 : index
    %c0_26 = arith.constant 0 : index
    %30 = vector.load %arg10[%c0_25, %c0_26] : memref<1x256xf32, #tpu.memory_space<vmem>>, vector<1x256xf32>
    %31 = vector.broadcast %30 : vector<1x256xf32> to vector<32x256xf32>
    %32 = arith.addf %29, %31 : vector<32x256xf32>
    %cst_27 = arith.constant 0.000000e+00 : f32
    %33 = vector.broadcast %cst_27 : f32 to vector<32x256xf32>
    %34 = arith.maximumf %32, %33 : vector<32x256xf32>
    %35 = arith.truncf %34 : vector<32x256xf32> to vector<32x256xbf16>
    %c0_28 = arith.constant 0 : index
    %c0_29 = arith.constant 0 : index
    %36 = vector.load %arg11[%c0_28, %c0_29] : memref<256x128xbf16, #tpu.memory_space<vmem>>, vector<256x128xbf16>
    %cst_30 = arith.constant dense<0.000000e+00> : vector<32x128xf32>
    %37 = tpu.matmul %35, %36, %cst_30 {dimension_numbers = #tpu.dot_dimension_numbers<[1], [0], [0], [1], [0, 0, 1, 1], [], []>} : vector<32x256xbf16>, vector<256x128xbf16>, vector<32x128xf32> -> vector<32x128xf32>
    %c0_31 = arith.constant 0 : index
    %c0_32 = arith.constant 0 : index
    %38 = vector.load %arg12[%c0_31, %c0_32] : memref<1x128xf32, #tpu.memory_space<vmem>>, vector<1x128xf32>
    %39 = vector.broadcast %38 : vector<1x128xf32> to vector<32x128xf32>
    %40 = arith.addf %37, %39 : vector<32x128xf32>
    %cst_33 = arith.constant 0.000000e+00 : f32
    %41 = vector.broadcast %cst_33 : f32 to vector<32x128xf32>
    %42 = arith.maximumf %40, %41 : vector<32x128xf32>
    %c0_34 = arith.constant 0 : index
    %c0_35 = arith.constant 0 : index
    %43 = vector.load %arg13[%c0_34, %c0_35] : memref<32x32xbf16, #tpu.memory_space<vmem>>, vector<32x32xbf16>
    %44 = arith.truncf %42 : vector<32x128xf32> to vector<32x128xbf16>
    %cst_36 = arith.constant dense<0.000000e+00> : vector<32x128xf32>
    %45 = tpu.matmul %43, %44, %cst_36 {dimension_numbers = #tpu.dot_dimension_numbers<[1], [0], [0], [1], [0, 0, 1, 1], [], []>} : vector<32x32xbf16>, vector<32x128xbf16>, vector<32x128xf32> -> vector<32x128xf32>
    %cst_37 = arith.constant 0.000000e+00 : f32
    %46 = vector.broadcast %cst_37 : f32 to vector<32x128xf32>
    %47 = arith.maximumf %45, %46 : vector<32x128xf32>
    %48 = arith.truncf %47 : vector<32x128xf32> to vector<32x128xbf16>
    %cst_38 = arith.constant dense<0.000000e+00> : vector<32x128xf32>
    %49 = tpu.matmul %43, %48, %cst_38 {dimension_numbers = #tpu.dot_dimension_numbers<[1], [0], [0], [1], [0, 0, 1, 1], [], []>} : vector<32x32xbf16>, vector<32x128xbf16>, vector<32x128xf32> -> vector<32x128xf32>
    %cst_39 = arith.constant 0.000000e+00 : f32
    %50 = vector.broadcast %cst_39 : f32 to vector<32x128xf32>
    %51 = arith.maximumf %49, %50 : vector<32x128xf32>
    %c0_40 = arith.constant 0 : index
    %c0_41 = arith.constant 0 : index
    %52 = vector.load %arg16[%c0_40, %c0_41] : memref<32x128xf32, #tpu.memory_space<vmem>>, vector<32x128xf32>
    tpu.vector_store %arg16[%c0_40, %c0_41], %47 {strides = array<i32>} : memref<32x128xf32, #tpu.memory_space<vmem>>, vector<32x128xf32>,
    %c0_42 = arith.constant 0 : index
    %c0_43 = arith.constant 0 : index
    %53 = vector.load %arg17[%c0_42, %c0_43] : memref<32x128xf32, #tpu.memory_space<vmem>>, vector<32x128xf32>
    tpu.vector_store %arg17[%c0_42, %c0_43], %51 {strides = array<i32>} : memref<32x128xf32, #tpu.memory_space<vmem>>, vector<32x128xf32>,
    %54 = arith.truncf %51 : vector<32x128xf32> to vector<32x128xbf16>
    %c0_44 = arith.constant 0 : index
    %c0_45 = arith.constant 0 : index
    %55 = vector.load %arg14[%c0_44, %c0_45] : memref<128x128xbf16, #tpu.memory_space<vmem>>, vector<128x128xbf16>
    %cst_46 = arith.constant dense<0.000000e+00> : vector<32x128xf32>
    %56 = tpu.matmul %54, %55, %cst_46 {dimension_numbers = #tpu.dot_dimension_numbers<[1], [0], [0], [1], [0, 0, 1, 1], [], []>} : vector<32x128xbf16>, vector<128x128xbf16>, vector<32x128xf32> -> vector<32x128xf32>
    %c0_47 = arith.constant 0 : index
    %c0_48 = arith.constant 0 : index
    %57 = vector.load %arg15[%c0_47, %c0_48] : memref<1x128xf32, #tpu.memory_space<vmem>>, vector<1x128xf32>
    %58 = vector.broadcast %57 : vector<1x128xf32> to vector<32x128xf32>
    %59 = arith.addf %56, %58 : vector<32x128xf32>
    %c0_49 = arith.constant 0 : index
    %c0_50 = arith.constant 0 : index
    %60 = vector.load %arg18[%c0_49, %c0_50] : memref<32x128xf32, #tpu.memory_space<vmem>>, vector<32x128xf32>
    tpu.vector_store %arg18[%c0_49, %c0_50], %59 {strides = array<i32>} : memref<32x128xf32, #tpu.memory_space<vmem>>, vector<32x128xf32>,
    return
  }
}

</mosaic_0001>

<llo_original>
// kernel: hspgcn_forward.1
$region0: #{hspgcn_forward.1}
  #allocation0 [shape = 'u32[]', space=smem, size = 0x4, offset = 0x4, fixed_abs, tag = 'smem constant byte address 0x4 - core index']
  #allocation1 [shape = 'u32[144,128]{1,0:T(1,128)}', space=vmem, size = 0x12000, scoped, tag = 'internal scratch']
  %s0 = inlined_call_operand.vmem [shape: f32[32,24], index: 0, kind: input, shape index: {}]
  %s1 = inlined_call_operand.vmem [shape: f32[32,24], index: 1, kind: input, shape index: {}]
  %s2 = inlined_call_operand.vmem [shape: f32[32,12], index: 2, kind: input, shape index: {}]
  %s3 = inlined_call_operand.hbm [shape: bf16[24,128], index: 3, kind: input, shape index: {}]
  %s4 = inlined_call_operand.hbm [shape: bf16[24,128], index: 4, kind: input, shape index: {}]
  %s5 = inlined_call_operand.hbm [shape: bf16[12,128], index: 5, kind: input, shape index: {}]
  %s6 = inlined_call_operand.vmem [shape: f32[1,128], index: 6, kind: input, shape index: {}]
  %s7 = inlined_call_operand.vmem [shape: bf16[128,256], index: 7, kind: input, shape index: {}]
  %s8 = inlined_call_operand.vmem [shape: f32[1,256], index: 8, kind: input, shape index: {}]
  %s9 = inlined_call_operand.hbm [shape: bf16[256,256], index: 9, kind: input, shape index: {}]
  %s10 = inlined_call_operand.vmem [shape: f32[1,256], index: 10, kind: input, shape index: {}]
  %s11 = inlined_call_operand.hbm [shape: bf16[256,128], index: 11, kind: input, shape index: {}]
  %s12 = inlined_call_operand.vmem [shape: f32[1,128], index: 12, kind: input, shape index: {}]
  %s13 = inlined_call_operand.vmem [shape: bf16[32,32], index: 13, kind: input, shape index: {}]
  %s14 = inlined_call_operand.hbm [shape: bf16[128,128], index: 14, kind: input, shape index: {}]
  %s15 = inlined_call_operand.hbm [shape: f32[1,128], index: 15, kind: input, shape index: {}]
  %s16 = inlined_call_operand.hbm [shape: f32[32,128], index: 16, kind: output, shape index: {0}]
  %s17 = inlined_call_operand.hbm [shape: f32[32,128], index: 17, kind: output, shape index: {1}]
  %s18 = inlined_call_operand.vmem [shape: f32[32,128], index: 18, kind: output, shape index: {2}]
  %19 = xla_tuple %s16, %s17, %s18
  %s20 = sld [smem:[#allocation0]]
  $region118: #{hspgcn_forward.1} parent=0
    _
  %s22 = ssub.s32 1, %s20
  %s23 = scalar_select 0, %s22, %s20
  $region1: #{hspgcn_forward.1} parent=0
    #allocation2 [shape = 'u8[6144]{0}', space=vmem, size = 0x1800, scoped, tag = 'input window, operand 3, single buffered']
    #allocation3 [shape = 's32[1]{0}', space=sflag, size = 0x4, scoped, tag = 'scoped memory for hspgcn_forward.1']
    #allocation4 [shape = 's32[1]{0}', space=sflag, size = 0x4, scoped, tag = 'scoped memory for hspgcn_forward.1']
    #allocation5 [shape = 'u8[6144]{0}', space=vmem, size = 0x1800, scoped, tag = 'input window, operand 4, single buffered']
    #allocation6 [shape = 's32[1]{0}', space=sflag, size = 0x4, scoped, tag = 'scoped memory for hspgcn_forward.1']
    #allocation7 [shape = 'u8[4096]{0}', space=vmem, size = 0x1000, scoped, tag = 'input window, operand 5, single buffered']
    #allocation8 [shape = 'u8[131072]{0}', space=vmem, size = 0x20000, scoped, tag = 'input window, operand 9, single buffered']
    #allocation9 [shape = 's32[1]{0}', space=sflag, size = 0x4, scoped, tag = 'scoped memory for hspgcn_forward.1']
    #allocation10 [shape = 'u8[65536]{0}', space=vmem, size = 0x10000, scoped, tag = 'input window, operand 11, single buffered']
    #allocation11 [shape = 'u8[32768]{0}', space=vmem, size = 0x8000, scoped, tag = 'input window, operand 14, single buffered']
    #allocation12 [shape = 's32[1]{0}', space=sflag, size = 0x4, scoped, tag = 'scoped memory for hspgcn_forward.1']
    #allocation13 [shape = 'u8[512]{0}', space=vmem, size = 0x400, scoped, tag = 'input window, operand 15, single buffered']
    #allocation14 [shape = 'u8[16384]{0}', space=vmem, size = 0x4000, scoped, tag = 'output window, operand 0, single buffered']
    #allocation15 [shape = 'u8[16384]{0}', space=vmem, size = 0x4000, scoped, tag = 'output window, operand 1, single buffered']
    #allocation16 [shape = 's32[1]{0}', space=sflag, size = 0x4, scoped, tag = 'scoped memory for hspgcn_forward.1']
    %24 = vsyncpa [#allocation3], 0
    %25 = vsyncpa [#allocation6], 0
    %26 = vsyncpa [#allocation9], 0
    %27 = vsyncpa [#allocation12], 0
    %28 = vsyncpa [#allocation4], 0
    %29 = vsyncpa [#allocation16], 0
    // Predicated region
    $region2: #{hspgcn_forward.1} parent=1 // pred_check
      _
    $region3: #{hspgcn_forward.1} parent=1 // pred_check_branch
      %31 = sbr.rel (0) target = $region5
    $region4: #{hspgcn_forward.1} parent=1 // pred_region
      _
    $region5: #{hspgcn_forward.1} parent=1 // pred_fallthru
      _
    // Predicated region
    $region6: #{hspgcn_forward.1} parent=1 // pred_check
      _
    $region7: #{hspgcn_forward.1} parent=1 // pred_check_branch
      %33 = sbr.rel (0) target = $region9
    $region8: #{hspgcn_forward.1} parent=1 // pred_region
      _
    $region9: #{hspgcn_forward.1} parent=1 // pred_fallthru
      _
    // Predicated region
    $region10: #{hspgcn_forward.1} parent=1 // pred_check
      _
    $region11: #{hspgcn_forward.1} parent=1 // pred_check_branch
      %35 = sbr.rel (0) target = $region13
    $region12: #{hspgcn_forward.1} parent=1 // pred_region
      _
    $region13: #{hspgcn_forward.1} parent=1 // pred_fallthru
      _
    // Predicated region
    $region14: #{hspgcn_forward.1} parent=1 // pred_check
      _
    $region15: #{hspgcn_forward.1} parent=1 // pred_check_branch
      %37 = sbr.rel (0) target = $region17
    $region16: #{hspgcn_forward.1} parent=1 // pred_region
      %s39 = ssub.s32 192, 192
      %40 = vsyncadd [#allocation3], %s39
      %s41 = sshll.u32 [#allocation2], 4
      %s42 = int_to_ptr.vmem [resolvable:$true] %s41
      %47 = dma.hbm_to_vmem [thread:$0]  %s3, 192, %s42, [#allocation3], 64, 64, 4
    $region17: #{hspgcn_forward.1} parent=1 // pred_fallthru
      _
    // Predicated region
    $region18: #{hspgcn_forward.1} parent=1 // pred_check
      _
    $region19: #{hspgcn_forward.1} parent=1 // pred_check_branch
      %49 = sbr.rel (0) target = $region21
    $region20: #{hspgcn_forward.1} parent=1 // pred_region
      %s51 = ssub.s32 192, 192
      %52 = vsyncadd [#allocation6], %s51
      %s53 = sshll.u32 [#allocation5], 4
      %s54 = int_to_ptr.vmem [resolvable:$true] %s53
      %59 = dma.hbm_to_vmem [thread:$0]  %s4, 192, %s54, [#allocation6], 64, 64, 4
    $region21: #{hspgcn_forward.1} parent=1 // pred_fallthru
      _
    // Predicated region
    $region22: #{hspgcn_forward.1} parent=1 // pred_check
      _
    $region23: #{hspgcn_forward.1} parent=1 // pred_check_branch
      %61 = sbr.rel (0) target = $region25
    $region24: #{hspgcn_forward.1} parent=1 // pred_region
      %s63 = ssub.s32 128, 128
      %64 = vsyncadd [#allocation6], %s63
      %s65 = sshll.u32 [#allocation7], 4
      %s66 = int_to_ptr.vmem [resolvable:$true] %s65
      %71 = dma.hbm_to_vmem [thread:$0]  %s5, 128, %s66, [#allocation6], 64, 64, 4
    $region25: #{hspgcn_forward.1} parent=1 // pred_fallthru
      _
    // Predicated region
    $region26: #{hspgcn_forward.1} parent=1 // pred_check
      _
    $region27: #{hspgcn_forward.1} parent=1 // pred_check_branch
      %73 = sbr.rel (0) target = $region29
    $region28: #{hspgcn_forward.1} parent=1 // pred_region
      _
    $region29: #{hspgcn_forward.1} parent=1 // pred_fallthru
      _
    // Predicated region
    $region30: #{hspgcn_forward.1} parent=1 // pred_check
      _
    $region31: #{hspgcn_forward.1} parent=1 // pred_check_branch
      %75 = sbr.rel (0) target = $region33
    $region32: #{hspgcn_forward.1} parent=1 // pred_region
      _
    $region33: #{hspgcn_forward.1} parent=1 // pred_fallthru
      _
    // Predicated region
    $region34: #{hspgcn_forward.1} parent=1 // pred_check
      _
    $region35: #{hspgcn_forward.1} parent=1 // pred_check_branch
      %77 = sbr.rel (0) target = $region37
    $region36: #{hspgcn_forward.1} parent=1 // pred_region
      _
    $region37: #{hspgcn_forward.1} parent=1 // pred_fallthru
      _
    // Predicated region
    $region38: #{hspgcn_forward.1} parent=1 // pred_check
      _
    $region39: #{hspgcn_forward.1} parent=1 // pred_check_branch
      %79 = sbr.rel (0) target = $region41
    $region40: #{hspgcn_forward.1} parent=1 // pred_region
      %s81 = ssub.s32 4096, 4096
      %82 = vsyncadd [#allocation9], %s81
      %s83 = sshll.u32 [#allocation8], 4
      %s84 = int_to_ptr.vmem [resolvable:$true] %s83
      %89 = dma.hbm_to_vmem [thread:$0]  %s9, 4096, %s84, [#allocation9], 128, 128, 8
    $region41: #{hspgcn_forward.1} parent=1 // pred_fallthru
      _
    // Predicated region
    $region42: #{hspgcn_forward.1} parent=1 // pred_check
      _
    $region43: #{hspgcn_forward.1} parent=1 // pred_check_branch
      %91 = sbr.rel (0) target = $region45
    $region44: #{hspgcn_forward.1} parent=1 // pred_region
      _
    $region45: #{hspgcn_forward.1} parent=1 // pred_fallthru
      _
    // Predicated region
    $region46: #{hspgcn_forward.1} parent=1 // pred_check
      _
    $region47: #{hspgcn_forward.1} parent=1 // pred_check_branch
      %93 = sbr.rel (0) target = $region49
    $region48: #{hspgcn_forward.1} parent=1 // pred_region
      %s95 = ssub.s32 2048, 2048
      %96 = vsyncadd [#allocation9], %s95
      %s97 = sshll.u32 [#allocation10], 4
      %s98 = int_to_ptr.vmem [resolvable:$true] %s97
      %103 = dma.hbm_to_vmem [thread:$0]  %s11, 2048, %s98, [#allocation9], 64, 64, 4
    $region49: #{hspgcn_forward.1} parent=1 // pred_fallthru
      _
    // Predicated region
    $region50: #{hspgcn_forward.1} parent=1 // pred_check
      _
    $region51: #{hspgcn_forward.1} parent=1 // pred_check_branch
      %105 = sbr.rel (0) target = $region53
    $region52: #{hspgcn_forward.1} parent=1 // pred_region
      _
    $region53: #{hspgcn_forward.1} parent=1 // pred_fallthru
      _
    // Predicated region
    $region54: #{hspgcn_forward.1} parent=1 // pred_check
      _
    $region55: #{hspgcn_forward.1} parent=1 // pred_check_branch
      %107 = sbr.rel (0) target = $region57
    $region56: #{hspgcn_forward.1} parent=1 // pred_region
      _
    $region57: #{hspgcn_forward.1} parent=1 // pred_fallthru
      _
    // Predicated region
    $region58: #{hspgcn_forward.1} parent=1 // pred_check
      _
    $region59: #{hspgcn_forward.1} parent=1 // pred_check_branch
      %109 = sbr.rel (0) target = $region61
    $region60: #{hspgcn_forward.1} parent=1 // pred_region
      %s111 = ssub.s32 1024, 1024
      %112 = vsyncadd [#allocation12], %s111
      %s113 = sshll.u32 [#allocation11], 4
      %s114 = int_to_ptr.vmem [resolvable:$true] %s113
      %119 = dma.hbm_to_vmem [thread:$0]  %s14, 1024, %s114, [#allocation12], 64, 64, 4
    $region61: #{hspgcn_forward.1} parent=1 // pred_fallthru
      _
    // Predicated region
    $region62: #{hspgcn_forward.1} parent=1 // pred_check
      _
    $region63: #{hspgcn_forward.1} parent=1 // pred_check_branch
      %121 = sbr.rel (0) target = $region65
    $region64: #{hspgcn_forward.1} parent=1 // pred_region
      %s123 = ssub.s32 16, 16
      %124 = vsyncadd [#allocation12], %s123
      %s126 = sshll.u32 [#allocation13], 4
      %s127 = int_to_ptr.vmem [resolvable:$true] %s126
      %129 = dma.hbm_to_vmem [thread:$0]  %s15, 16, %s127, [#allocation12]
    $region65: #{hspgcn_forward.1} parent=1 // pred_fallthru
      _
    // Predicated region
    $region66: #{hspgcn_forward.1} parent=1 // pred_check
      _
    $region67: #{hspgcn_forward.1} parent=1 // pred_check_branch
      %131 = sbr.rel (0) target = $region69
    $region68: #{hspgcn_forward.1} parent=1 // pred_region
      %132 = dma.done [#allocation3], 192
    $region69: #{hspgcn_forward.1} parent=1 // pred_fallthru
      _
    // Predicated region
    $region70: #{hspgcn_forward.1} parent=1 // pred_check
      _
    $region71: #{hspgcn_forward.1} parent=1 // pred_check_branch
      %134 = sbr.rel (0) target = $region73
    $region72: #{hspgcn_forward.1} parent=1 // pred_region
      %135 = dma.done [#allocation6], 192
    $region73: #{hspgcn_forward.1} parent=1 // pred_fallthru
      _
    // Predicated region
    $region74: #{hspgcn_forward.1} parent=1 // pred_check
      _
    $region75: #{hspgcn_forward.1} parent=1 // pred_check_branch
      %137 = sbr.rel (0) target = $region77
    $region76: #{hspgcn_forward.1} parent=1 // pred_region
      %138 = dma.done [#allocation6], 128
    $region77: #{hspgcn_forward.1} parent=1 // pred_fallthru
      _
    // Predicated region
    $region78: #{hspgcn_forward.1} parent=1 // pred_check
      _
    $region79: #{hspgcn_forward.1} parent=1 // pred_check_branch
      %140 = sbr.rel (0) target = $region81
    $region80: #{hspgcn_forward.1} parent=1 // pred_region
      %141 = dma.done [#allocation9], 4096
    $region81: #{hspgcn_forward.1} parent=1 // pred_fallthru
      _
    // Predicated region
    $region82: #{hspgcn_forward.1} parent=1 // pred_check
      _
    $region83: #{hspgcn_forward.1} parent=1 // pred_check_branch
      %143 = sbr.rel (0) target = $region85
    $region84: #{hspgcn_forward.1} parent=1 // pred_region
      %144 = dma.done [#allocation9], 2048
    $region85: #{hspgcn_forward.1} parent=1 // pred_fallthru
      _
    // Predicated region
    $region86: #{hspgcn_forward.1} parent=1 // pred_check
      _
    $region87: #{hspgcn_forward.1} parent=1 // pred_check_branch
      %146 = sbr.rel (0) target = $region89
    $region88: #{hspgcn_forward.1} parent=1 // pred_region
      %147 = dma.done [#allocation12], 1024
    $region89: #{hspgcn_forward.1} parent=1 // pred_fallthru
      _
    // Predicated region
    $region90: #{hspgcn_forward.1} parent=1 // pred_check
      _
    $region91: #{hspgcn_forward.1} parent=1 // pred_check_branch
      %149 = sbr.rel (0) target = $region93
    $region92: #{hspgcn_forward.1} parent=1 // pred_region
      %150 = dma.done [#allocation12], 16
    $region93: #{hspgcn_forward.1} parent=1 // pred_fallthru
      _
    %v152 = vld [vmem:[%s0] sm:$0xff]
    %v153 = vld [vmem:[%s0 + $0x8] sm:$0xff]
    %v154 = vld [vmem:[%s0 + $0x10] sm:$0xff]
    %v155 = vld [vmem:[%s0 + $0x18] sm:$0xff]
    %v156 = vpack.c.bf16 %v153, %v152
    %v157 = vpack.c.bf16 %v155, %v154
    %v158 = vld [vmem:[#allocation2] sm:$0xf]
    %v159 = vld [vmem:[#allocation2 + $0x4] sm:$0xf]
    %v160 = vld [vmem:[#allocation2 + $0x8] sm:$0xf]
    %v161 = vld [vmem:[%s1] sm:$0xff]
    %v162 = vld [vmem:[%s1 + $0x8] sm:$0xff]
    %v163 = vld [vmem:[%s1 + $0x10] sm:$0xff]
    %v164 = vld [vmem:[%s1 + $0x18] sm:$0xff]
    %v165 = vpack.c.bf16 %v162, %v161
    %v166 = vpack.c.bf16 %v164, %v163
    %v167 = vld [vmem:[#allocation5] sm:$0xf]
    %v168 = vld [vmem:[#allocation5 + $0x4] sm:$0xf]
    %v169 = vld [vmem:[#allocation5 + $0x8] sm:$0xf]
    %v173 = vunpack.c.l.b16 %v167
    %v174 = vunpack.c.l.b16 %v168
    %v175 = vunpack.c.l.b16 %v169
    %v176 = vpack.c.b16 %v174, %v173
    %v177 = vpack.c.b16 %v175, %v175
    %vm179 = vcmask 195584
    %v181 = vsel %vm179, %v165, 0
    %v184 = vsel %vm179, %v166, 0
    %vm186 = vcmask 1043456
    %v188 = vsel %vm186, %v177, 0
    %190 = vmatprep.subr.bf16.mxu0 0
    %191 = vmatpush1.bf16.msra.mxu0 %v176
    %192 = vmatprep.subr.bf16.mxu0 0
    %193 = vmatpush1.bf16.msra.mxu0 %v188
    %194 = vmatprep.subr.bf16.mxu0 0
    %195 = vmatpush1.bf16.msra.mxu0 0
    %196 = vmatprep.subr.bf16.mxu0 0
    %197 = vmatpush1.bf16.msra.mxu0 0
    %198 = vmatprep.subr.bf16.mxu0 0
    %199 = vmatpush1.bf16.msra.mxu0 0
    %200 = vmatprep.subr.bf16.mxu0 0
    %201 = vmatpush1.bf16.msra.mxu0 0
    %202 = vmatprep.subr.bf16.mxu0 0
    %203 = vmatpush1.bf16.msra.mxu0 0
    %204 = vmatprep.subr.bf16.mxu0 0
    %205 = vmatpush1.bf16.msra.mxu0 0
    %206 = vmatprep.subr.bf16.mxu0 0
    %207 = vmatpush1.bf16.msra.mxu0 0
    %208 = vmatprep.subr.bf16.mxu0 0
    %209 = vmatpush1.bf16.msra.mxu0 0
    %210 = vmatprep.subr.bf16.mxu0 0
    %211 = vmatpush1.bf16.msra.mxu0 0
    %212 = vmatprep.subr.bf16.mxu0 0
    %213 = vmatpush1.bf16.msra.mxu0 0
    %214 = vmatprep.subr.bf16.mxu0 0
    %215 = vmatpush1.bf16.msra.mxu0 0
    %216 = vmatprep.subr.bf16.mxu0 0
    %217 = vmatpush1.bf16.msra.mxu0 0
    %218 = vmatprep.subr.bf16.mxu0 0
    %219 = vmatpush1.bf16.msra.mxu0 0
    %220 = vmatprep.subr.bf16.mxu0 0
    %221 = vmatpush1.bf16.msra.mxu0 0
    %222 = vmatprep.mubr.bf16.mxu0 0
    %223 = vmatmul.mubr.bf16.gmra.mrb[0].mxu0 %v181
    %v224 = vpop.f32.mrb[0].mxu0
    %v225 = vadd.f32 0.0, %v224
    %v226 = vpop.f32.mrb[0].mxu0
    %v227 = vpop.f32.mrb[0].mxu0
    %v228 = vadd.f32 0.0, %v227
    %v229 = vpop.f32.mrb[0].mxu0
    %230 = vmatprep.mubr.bf16.mxu0 0
    %231 = vmatmul.mubr.bf16.gmra.mrb[0].mxu0 %v184
    %v232 = vpop.f32.mrb[0].mxu0
    %v233 = vadd.f32 0.0, %v232
    %v234 = vpop.f32.mrb[0].mxu0
    %v235 = vpop.f32.mrb[0].mxu0
    %v236 = vadd.f32 0.0, %v235
    %v237 = vpop.f32.mrb[0].mxu0
    %238 = vdwg.mxu0
    %v242 = vunpack.c.l.b16 %v158
    %v243 = vunpack.c.l.b16 %v159
    %v244 = vunpack.c.l.b16 %v160
    %v245 = vpack.c.b16 %v243, %v242
    %v246 = vpack.c.b16 %v244, %v244
    %v249 = vsel %vm179, %v156, 0
    %v252 = vsel %vm179, %v157, 0
    %v255 = vsel %vm186, %v246, 0
    %257 = vmatprep.subr.bf16.mxu0 0
    %258 = vmatpush1.bf16.msra.mxu0 %v245
    %259 = vmatprep.subr.bf16.mxu0 0
    %260 = vmatpush1.bf16.msra.mxu0 %v255
    %261 = vmatprep.subr.bf16.mxu0 0
    %262 = vmatpush1.bf16.msra.mxu0 0
    %263 = vmatprep.subr.bf16.mxu0 0
    %264 = vmatpush1.bf16.msra.mxu0 0
    %265 = vmatprep.subr.bf16.mxu0 0
    %266 = vmatpush1.bf16.msra.mxu0 0
    %267 = vmatprep.subr.bf16.mxu0 0
    %268 = vmatpush1.bf16.msra.mxu0 0
    %269 = vmatprep.subr.bf16.mxu0 0
    %270 = vmatpush1.bf16.msra.mxu0 0
    %271 = vmatprep.subr.bf16.mxu0 0
    %272 = vmatpush1.bf16.msra.mxu0 0
    %273 = vmatprep.subr.bf16.mxu0 0
    %274 = vmatpush1.bf16.msra.mxu0 0
    %275 = vmatprep.subr.bf16.mxu0 0
    %276 = vmatpush1.bf16.msra.mxu0 0
    %277 = vmatprep.subr.bf16.mxu0 0
    %278 = vmatpush1.bf16.msra.mxu0 0
    %279 = vmatprep.subr.bf16.mxu0 0
    %280 = vmatpush1.bf16.msra.mxu0 0
    %281 = vmatprep.subr.bf16.mxu0 0
    %282 = vmatpush1.bf16.msra.mxu0 0
    %283 = vmatprep.subr.bf16.mxu0 0
    %284 = vmatpush1.bf16.msra.mxu0 0
    %285 = vmatprep.subr.bf16.mxu0 0
    %286 = vmatpush1.bf16.msra.mxu0 0
    %287 = vmatprep.subr.bf16.mxu0 0
    %288 = vmatpush1.bf16.msra.mxu0 0
    %289 = vmatprep.mubr.bf16.mxu0 0
    %290 = vmatmul.mubr.bf16.gmra.mrb[0].mxu0 %v249
    %v291 = vpop.f32.mrb[0].mxu0
    %v292 = vadd.f32 %v225, %v291
    %v293 = vpop.f32.mrb[0].mxu0
    %v294 = vpop.f32.mrb[0].mxu0
    %v295 = vadd.f32 %v228, %v294
    %v296 = vpop.f32.mrb[0].mxu0
    %297 = vmatprep.mubr.bf16.mxu0 0
    %298 = vmatmul.mubr.bf16.gmra.mrb[0].mxu0 %v252
    %v299 = vpop.f32.mrb[0].mxu0
    %v300 = vadd.f32 %v233, %v299
    %v301 = vpop.f32.mrb[0].mxu0
    %v302 = vpop.f32.mrb[0].mxu0
    %v303 = vadd.f32 %v236, %v302
    %v304 = vpop.f32.mrb[0].mxu0
    %305 = vdwg.mxu0
    %v306 = vld [vmem:[%s2] sm:$0xff]
    %v307 = vld [vmem:[%s2 + $0x8] sm:$0xff]
    %v308 = vld [vmem:[%s2 + $0x10] sm:$0xff]
    %v309 = vld [vmem:[%s2 + $0x18] sm:$0xff]
    %v310 = vpack.c.bf16 %v307, %v306
    %v311 = vpack.c.bf16 %v309, %v308
    %v312 = vld [vmem:[#allocation7] sm:$0xf]
    %v313 = vld [vmem:[#allocation7 + $0x4] sm:$0x3]
    %v316 = vunpack.c.l.b16 %v312
    %v317 = vunpack.c.l.b16 %v313
    %v318 = vpack.c.b16 %v317, %v316
    %vm319 = vcmask 97280
    %v321 = vsel %vm319, %v310, 0
    %v324 = vsel %vm319, %v311, 0
    %vm326 = vcmask 1045504
    %v328 = vsel %vm326, %v318, 0
    %330 = vmatprep.subr.bf16.mxu0 0
    %331 = vmatpush1.bf16.msra.mxu0 %v328
    %332 = vmatprep.subr.bf16.mxu0 0
    %333 = vmatpush1.bf16.msra.mxu0 0
    %334 = vmatprep.subr.bf16.mxu0 0
    %335 = vmatpush1.bf16.msra.mxu0 0
    %336 = vmatprep.subr.bf16.mxu0 0
    %337 = vmatpush1.bf16.msra.mxu0 0
    %338 = vmatprep.subr.bf16.mxu0 0
    %339 = vmatpush1.bf16.msra.mxu0 0
    %340 = vmatprep.subr.bf16.mxu0 0
    %341 = vmatpush1.bf16.msra.mxu0 0
    %342 = vmatprep.subr.bf16.mxu0 0
    %343 = vmatpush1.bf16.msra.mxu0 0
    %344 = vmatprep.subr.bf16.mxu0 0
    %345 = vmatpush1.bf16.msra.mxu0 0
    %346 = vmatprep.subr.bf16.mxu0 0
    %347 = vmatpush1.bf16.msra.mxu0 0
    %348 = vmatprep.subr.bf16.mxu0 0
    %349 = vmatpush1.bf16.msra.mxu0 0
    %350 = vmatprep.subr.bf16.mxu0 0
    %351 = vmatpush1.bf16.msra.mxu0 0
    %352 = vmatprep.subr.bf16.mxu0 0
    %353 = vmatpush1.bf16.msra.mxu0 0
    %354 = vmatprep.subr.bf16.mxu0 0
    %355 = vmatpush1.bf16.msra.mxu0 0
    %356 = vmatprep.subr.bf16.mxu0 0
    %357 = vmatpush1.bf16.msra.mxu0 0
    %358 = vmatprep.subr.bf16.mxu0 0
    %359 = vmatpush1.bf16.msra.mxu0 0
    %360 = vmatprep.subr.bf16.mxu0 0
    %361 = vmatpush1.bf16.msra.mxu0 0
    %362 = vmatprep.mubr.bf16.mxu0 0
    %363 = vmatmul.mubr.bf16.gmra.mrb[0].mxu0 %v321
    %v364 = vpop.f32.mrb[0].mxu0
    %v365 = vadd.f32 0.0, %v364
    %v366 = vpop.f32.mrb[0].mxu0
    %v367 = vpop.f32.mrb[0].mxu0
    %v368 = vadd.f32 0.0, %v367
    %v369 = vpop.f32.mrb[0].mxu0
    %370 = vmatprep.mubr.bf16.mxu0 0
    %371 = vmatmul.mubr.bf16.gmra.mrb[0].mxu0 %v324
    %v372 = vpop.f32.mrb[0].mxu0
    %v373 = vadd.f32 0.0, %v372
    %v374 = vpop.f32.mrb[0].mxu0
    %v375 = vpop.f32.mrb[0].mxu0
    %v376 = vadd.f32 0.0, %v375
    %v377 = vpop.f32.mrb[0].mxu0
    %378 = vdwg.mxu0
    %v379 = vadd.f32 %v292, %v365
    %v380 = vadd.f32 %v295, %v368
    %v381 = vadd.f32 %v300, %v373
    %v382 = vadd.f32 %v303, %v376
    %v383 = vld [vmem:[%s6] sm:$0x1]
    %v385 = vlaneseq
    %v386 = vshrl.u32 %v385, 7
    %v387 = vsub.s32 0, %v386
    %v388 = vrot.slane %v383, %v387
    %v390 = vadd.f32 %v379, %v388
    %v391 = vadd.f32 %v380, %v388
    %v392 = vadd.f32 %v381, %v388
    %v393 = vadd.f32 %v382, %v388
    %v394 = vmax.f32 %v390, 0.0
    %v395 = vmax.f32 %v391, 0.0
    %v396 = vmax.f32 %v392, 0.0
    %v397 = vmax.f32 %v393, 0.0
    %v398 = vpack.c.bf16 %v395, %v394
    %v399 = vpack.c.bf16 %v397, %v396
    %v400 = vld [vmem:[%s7] sm:$0xff]
    %v401 = vld [vmem:[%s7 + $0x8] sm:$0xff]
    %v402 = vld [vmem:[%s7 + $0x10] sm:$0xff]
    %v403 = vld [vmem:[%s7 + $0x18] sm:$0xff]
    %v404 = vld [vmem:[%s7 + $0x20] sm:$0xff]
    %v405 = vld [vmem:[%s7 + $0x28] sm:$0xff]
    %v406 = vld [vmem:[%s7 + $0x30] sm:$0xff]
    %v407 = vld [vmem:[%s7 + $0x38] sm:$0xff]
    %v408 = vld [vmem:[%s7 + $0x40] sm:$0xff]
    %v409 = vld [vmem:[%s7 + $0x48] sm:$0xff]
    %v410 = vld [vmem:[%s7 + $0x50] sm:$0xff]
    %v411 = vld [vmem:[%s7 + $0x58] sm:$0xff]
    %v412 = vld [vmem:[%s7 + $0x60] sm:$0xff]
    %v413 = vld [vmem:[%s7 + $0x68] sm:$0xff]
    %v414 = vld [vmem:[%s7 + $0x70] sm:$0xff]
    %v415 = vld [vmem:[%s7 + $0x78] sm:$0xff]
    %v416 = vld [vmem:[%s8] sm:$0x3]
    %v418 = vlaneseq
    %v419 = vshrl.u32 %v418, 7
    %v420 = vsub.s32 0, %v419
    %v421 = vrot.slane %v416, %v420
    %v422 = vlaneseq
    %v423 = vshrl.u32 %v422, 7
    %v424 = vsub.s32 1, %v423
    %v425 = vrot.slane %v416, %v424
    %v444 = vunpack.c.l.b16 %v400
    %v445 = vunpack.c.h.b16 %v400
    %v446 = vunpack.c.l.b16 %v401
    %v447 = vunpack.c.h.b16 %v401
    %v448 = vunpack.c.l.b16 %v402
    %v449 = vunpack.c.h.b16 %v402
    %v450 = vunpack.c.l.b16 %v403
    %v451 = vunpack.c.h.b16 %v403
    %v452 = vunpack.c.l.b16 %v404
    %v453 = vunpack.c.h.b16 %v404
    %v454 = vunpack.c.l.b16 %v405
    %v455 = vunpack.c.h.b16 %v405
    %v456 = vunpack.c.l.b16 %v406
    %v457 = vunpack.c.h.b16 %v406
    %v458 = vunpack.c.l.b16 %v407
    %v459 = vunpack.c.h.b16 %v407
    %v460 = vunpack.c.l.b16 %v408
    %v461 = vunpack.c.h.b16 %v408
    %v462 = vunpack.c.l.b16 %v409
    %v463 = vunpack.c.h.b16 %v409
    %v464 = vunpack.c.l.b16 %v410
    %v465 = vunpack.c.h.b16 %v410
    %v466 = vunpack.c.l.b16 %v411
    %v467 = vunpack.c.h.b16 %v411
    %v468 = vunpack.c.l.b16 %v412
    %v469 = vunpack.c.h.b16 %v412
    %v470 = vunpack.c.l.b16 %v413
    %v471 = vunpack.c.h.b16 %v413
    %v472 = vunpack.c.l.b16 %v414
    %v473 = vunpack.c.h.b16 %v414
    %v474 = vunpack.c.l.b16 %v415
    %v475 = vunpack.c.h.b16 %v415
    %v476 = vpack.c.b16 %v446, %v444
    %v477 = vpack.c.b16 %v447, %v445
    %v478 = vpack.c.b16 %v450, %v448
    %v479 = vpack.c.b16 %v451, %v449
    %v480 = vpack.c.b16 %v454, %v452
    %v481 = vpack.c.b16 %v455, %v453
    %v482 = vpack.c.b16 %v458, %v456
    %v483 = vpack.c.b16 %v459, %v457
    %v484 = vpack.c.b16 %v462, %v460
    %v485 = vpack.c.b16 %v463, %v461
    %v486 = vpack.c.b16 %v466, %v464
    %v487 = vpack.c.b16 %v467, %v465
    %v488 = vpack.c.b16 %v470, %v468
    %v489 = vpack.c.b16 %v471, %v469
    %v490 = vpack.c.b16 %v474, %v472
    %v491 = vpack.c.b16 %v475, %v473
    %508 = vmatprep.subr.bf16.mxu0 %v477
    %509 = vmatpush1.bf16.msra.mxu0 %v476
    %510 = vmatprep.subr.bf16.mxu0 %v479
    %511 = vmatpush1.bf16.msra.mxu0 %v478
    %512 = vmatprep.subr.bf16.mxu0 %v481
    %513 = vmatpush1.bf16.msra.mxu0 %v480
    %514 = vmatprep.subr.bf16.mxu0 %v483
    %515 = vmatpush1.bf16.msra.mxu0 %v482
    %516 = vmatprep.subr.bf16.mxu0 %v485
    %517 = vmatpush1.bf16.msra.mxu0 %v484
    %518 = vmatprep.subr.bf16.mxu0 %v487
    %519 = vmatpush1.bf16.msra.mxu0 %v486
    %520 = vmatprep.subr.bf16.mxu0 %v489
    %521 = vmatpush1.bf16.msra.mxu0 %v488
    %522 = vmatprep.subr.bf16.mxu0 %v491
    %523 = vmatpush1.bf16.msra.mxu0 %v490
    %524 = vmatprep.subr.bf16.mxu0 0
    %525 = vmatpush1.bf16.msra.mxu0 0
    %526 = vmatprep.subr.bf16.mxu0 0
    %527 = vmatpush1.bf16.msra.mxu0 0
    %528 = vmatprep.subr.bf16.mxu0 0
    %529 = vmatpush1.bf16.msra.mxu0 0
    %530 = vmatprep.subr.bf16.mxu0 0
    %531 = vmatpush1.bf16.msra.mxu0 0
    %532 = vmatprep.subr.bf16.mxu0 0
    %533 = vmatpush1.bf16.msra.mxu0 0
    %534 = vmatprep.subr.bf16.mxu0 0
    %535 = vmatpush1.bf16.msra.mxu0 0
    %536 = vmatprep.subr.bf16.mxu0 0
    %537 = vmatpush1.bf16.msra.mxu0 0
    %538 = vmatprep.subr.bf16.mxu0 0
    %539 = vmatpush1.bf16.msra.mxu0 0
    %540 = vmatprep.mubr.bf16.mxu0 0
    %541 = vmatmul.mubr.bf16.gmra.mrb[0].mxu0 %v398
    %v542 = vpop.f32.mrb[0].mxu0
    %v543 = vadd.f32 %v421, %v542
    %v544 = vpop.f32.mrb[0].mxu0
    %v545 = vadd.f32 %v425, %v544
    %v546 = vpop.f32.mrb[0].mxu0
    %v547 = vadd.f32 %v421, %v546
    %v548 = vpop.f32.mrb[0].mxu0
    %v549 = vadd.f32 %v425, %v548
    %550 = vmatprep.mubr.bf16.mxu0 0
    %551 = vmatmul.mubr.bf16.gmra.mrb[0].mxu0 %v399
    %v552 = vpop.f32.mrb[0].mxu0
    %v553 = vadd.f32 %v421, %v552
    %v554 = vpop.f32.mrb[0].mxu0
    %v555 = vadd.f32 %v425, %v554
    %v556 = vpop.f32.mrb[0].mxu0
    %v557 = vadd.f32 %v421, %v556
    %v558 = vpop.f32.mrb[0].mxu0
    %v559 = vadd.f32 %v425, %v558
    %560 = vdwg.mxu0
    %v561 = vmax.f32 %v543, 0.0
    %v562 = vmax.f32 %v545, 0.0
    %v563 = vmax.f32 %v547, 0.0
    %v564 = vmax.f32 %v549, 0.0
    %v565 = vmax.f32 %v553, 0.0
    %v566 = vmax.f32 %v555, 0.0
    %v567 = vmax.f32 %v557, 0.0
    %v568 = vmax.f32 %v559, 0.0
    %v569 = vpack.c.bf16 %v563, %v561
    %v570 = vpack.c.bf16 %v564, %v562
    %v571 = vpack.c.bf16 %v567, %v565
    %v572 = vpack.c.bf16 %v568, %v566
    %v573 = vld [vmem:[#allocation8] sm:$0xff]
    %v574 = vld [vmem:[#allocation8 + $0x8] sm:$0xff]
    %v575 = vld [vmem:[#allocation8 + $0x10] sm:$0xff]
    %v576 = vld [vmem:[#allocation8 + $0x18] sm:$0xff]
    %v577 = vld [vmem:[#allocation8 + $0x20] sm:$0xff]
    %v578 = vld [vmem:[#allocation8 + $0x28] sm:$0xff]
    %v579 = vld [vmem:[#allocation8 + $0x30] sm:$0xff]
    %v580 = vld [vmem:[#allocation8 + $0x38] sm:$0xff]
    %v581 = vld [vmem:[#allocation8 + $0x40] sm:$0xff]
    %v582 = vld [vmem:[#allocation8 + $0x48] sm:$0xff]
    %v583 = vld [vmem:[#allocation8 + $0x50] sm:$0xff]
    %v584 = vld [vmem:[#allocation8 + $0x58] sm:$0xff]
    %v585 = vld [vmem:[#allocation8 + $0x60] sm:$0xff]
    %v586 = vld [vmem:[#allocation8 + $0x68] sm:$0xff]
    %v587 = vld [vmem:[#allocation8 + $0x70] sm:$0xff]
    %v588 = vld [vmem:[#allocation8 + $0x78] sm:$0xff]
    %v589 = vld [vmem:[#allocation8 + $0x80] sm:$0xff]
    %v590 = vld [vmem:[#allocation8 + $0x88] sm:$0xff]
    %v591 = vld [vmem:[#allocation8 + $0x90] sm:$0xff]
    %v592 = vld [vmem:[#allocation8 + $0x98] sm:$0xff]
    %v593 = vld [vmem:[#allocation8 + $0xa0] sm:$0xff]
    %v594 = vld [vmem:[#allocation8 + $0xa8] sm:$0xff]
    %v595 = vld [vmem:[#allocation8 + $0xb0] sm:$0xff]
    %v596 = vld [vmem:[#allocation8 + $0xb8] sm:$0xff]
    %v597 = vld [vmem:[#allocation8 + $0xc0] sm:$0xff]
    %v598 = vld [vmem:[#allocation8 + $0xc8] sm:$0xff]
    %v599 = vld [vmem:[#allocation8 + $0xd0] sm:$0xff]
    %v600 = vld [vmem:[#allocation8 + $0xd8] sm:$0xff]
    %v601 = vld [vmem:[#allocation8 + $0xe0] sm:$0xff]
    %v602 = vld [vmem:[#allocation8 + $0xe8] sm:$0xff]
    %v603 = vld [vmem:[#allocation8 + $0xf0] sm:$0xff]
    %v604 = vld [vmem:[#allocation8 + $0xf8] sm:$0xff]
    %v605 = vld [vmem:[%s10] sm:$0x3]
    %v607 = vlaneseq
    %v608 = vshrl.u32 %v607, 7
    %v609 = vsub.s32 0, %v608
    %v610 = vrot.slane %v605, %v609
    %v611 = vlaneseq
    %v612 = vshrl.u32 %v611, 7
    %v613 = vsub.s32 1, %v612
    %v614 = vrot.slane %v605, %v613
    %v649 = vunpack.c.l.b16 %v573
    %v650 = vunpack.c.h.b16 %v573
    %v651 = vunpack.c.l.b16 %v574
    %v652 = vunpack.c.h.b16 %v574
    %v653 = vunpack.c.l.b16 %v575
    %v654 = vunpack.c.h.b16 %v575
    %v655 = vunpack.c.l.b16 %v576
    %v656 = vunpack.c.h.b16 %v576
    %v657 = vunpack.c.l.b16 %v577
    %v658 = vunpack.c.h.b16 %v577
    %v659 = vunpack.c.l.b16 %v578
    %v660 = vunpack.c.h.b16 %v578
    %v661 = vunpack.c.l.b16 %v579
    %v662 = vunpack.c.h.b16 %v579
    %v663 = vunpack.c.l.b16 %v580
    %v664 = vunpack.c.h.b16 %v580
    %v665 = vunpack.c.l.b16 %v581
    %v666 = vunpack.c.h.b16 %v581
    %v667 = vunpack.c.l.b16 %v582
    %v668 = vunpack.c.h.b16 %v582
    %v669 = vunpack.c.l.b16 %v583
    %v670 = vunpack.c.h.b16 %v583
    %v671 = vunpack.c.l.b16 %v584
    %v672 = vunpack.c.h.b16 %v584
    %v673 = vunpack.c.l.b16 %v585
    %v674 = vunpack.c.h.b16 %v585
    %v675 = vunpack.c.l.b16 %v586
    %v676 = vunpack.c.h.b16 %v586
    %v677 = vunpack.c.l.b16 %v587
    %v678 = vunpack.c.h.b16 %v587
    %v679 = vunpack.c.l.b16 %v588
    %v680 = vunpack.c.h.b16 %v588
    %v681 = vunpack.c.l.b16 %v589
    %v682 = vunpack.c.h.b16 %v589
    %v683 = vunpack.c.l.b16 %v590
    %v684 = vunpack.c.h.b16 %v590
    %v685 = vunpack.c.l.b16 %v591
    %v686 = vunpack.c.h.b16 %v591
    %v687 = vunpack.c.l.b16 %v592
    %v688 = vunpack.c.h.b16 %v592
    %v689 = vunpack.c.l.b16 %v593
    %v690 = vunpack.c.h.b16 %v593
    %v691 = vunpack.c.l.b16 %v594
    %v692 = vunpack.c.h.b16 %v594
    %v693 = vunpack.c.l.b16 %v595
    %v694 = vunpack.c.h.b16 %v595
    %v695 = vunpack.c.l.b16 %v596
    %v696 = vunpack.c.h.b16 %v596
    %v697 = vunpack.c.l.b16 %v597
    %v698 = vunpack.c.h.b16 %v597
    %v699 = vunpack.c.l.b16 %v598
    %v700 = vunpack.c.h.b16 %v598
    %v701 = vunpack.c.l.b16 %v599
    %v702 = vunpack.c.h.b16 %v599
    %v703 = vunpack.c.l.b16 %v600
    %v704 = vunpack.c.h.b16 %v600
    %v705 = vunpack.c.l.b16 %v601
    %v706 = vunpack.c.h.b16 %v601
    %v707 = vunpack.c.l.b16 %v602
    %v708 = vunpack.c.h.b16 %v602
    %v709 = vunpack.c.l.b16 %v603
    %v710 = vunpack.c.h.b16 %v603
    %v711 = vunpack.c.l.b16 %v604
    %v712 = vunpack.c.h.b16 %v604
    %v713 = vpack.c.b16 %v651, %v649
    %v714 = vpack.c.b16 %v652, %v650
    %v715 = vpack.c.b16 %v655, %v653
    %v716 = vpack.c.b16 %v656, %v654
    %v717 = vpack.c.b16 %v659, %v657
    %v718 = vpack.c.b16 %v660, %v658
    %v719 = vpack.c.b16 %v663, %v661
    %v720 = vpack.c.b16 %v664, %v662
    %v721 = vpack.c.b16 %v667, %v665
    %v722 = vpack.c.b16 %v668, %v666
    %v723 = vpack.c.b16 %v671, %v669
    %v724 = vpack.c.b16 %v672, %v670
    %v725 = vpack.c.b16 %v675, %v673
    %v726 = vpack.c.b16 %v676, %v674
    %v727 = vpack.c.b16 %v679, %v677
    %v728 = vpack.c.b16 %v680, %v678
    %v729 = vpack.c.b16 %v683, %v681
    %v730 = vpack.c.b16 %v684, %v682
    %v731 = vpack.c.b16 %v687, %v685
    %v732 = vpack.c.b16 %v688, %v686
    %v733 = vpack.c.b16 %v691, %v689
    %v734 = vpack.c.b16 %v692, %v690
    %v735 = vpack.c.b16 %v695, %v693
    %v736 = vpack.c.b16 %v696, %v694
    %v737 = vpack.c.b16 %v699, %v697
    %v738 = vpack.c.b16 %v700, %v698
    %v739 = vpack.c.b16 %v703, %v701
    %v740 = vpack.c.b16 %v704, %v702
    %v741 = vpack.c.b16 %v707, %v705
    %v742 = vpack.c.b16 %v708, %v706
    %v743 = vpack.c.b16 %v711, %v709
    %v744 = vpack.c.b16 %v712, %v710
    %777 = vmatprep.subr.bf16.mxu0 %v714
    %778 = vmatpush1.bf16.msra.mxu0 %v713
    %779 = vmatprep.subr.bf16.mxu0 %v716
    %780 = vmatpush1.bf16.msra.mxu0 %v715
    %781 = vmatprep.subr.bf16.mxu0 %v718
    %782 = vmatpush1.bf16.msra.mxu0 %v717
    %783 = vmatprep.subr.bf16.mxu0 %v720
    %784 = vmatpush1.bf16.msra.mxu0 %v719
    %785 = vmatprep.subr.bf16.mxu0 %v722
    %786 = vmatpush1.bf16.msra.mxu0 %v721
    %787 = vmatprep.subr.bf16.mxu0 %v724
    %788 = vmatpush1.bf16.msra.mxu0 %v723
    %789 = vmatprep.subr.bf16.mxu0 %v726
    %790 = vmatpush1.bf16.msra.mxu0 %v725
    %791 = vmatprep.subr.bf16.mxu0 %v728
    %792 = vmatpush1.bf16.msra.mxu0 %v727
    %793 = vmatprep.subr.bf16.mxu0 %v730
    %794 = vmatpush1.bf16.msra.mxu0 %v729
    %795 = vmatprep.subr.bf16.mxu0 %v732
    %796 = vmatpush1.bf16.msra.mxu0 %v731
    %797 = vmatprep.subr.bf16.mxu0 %v734
    %798 = vmatpush1.bf16.msra.mxu0 %v733
    %799 = vmatprep.subr.bf16.mxu0 %v736
    %800 = vmatpush1.bf16.msra.mxu0 %v735
    %801 = vmatprep.subr.bf16.mxu0 %v738
    %802 = vmatpush1.bf16.msra.mxu0 %v737
    %803 = vmatprep.subr.bf16.mxu0 %v740
    %804 = vmatpush1.bf16.msra.mxu0 %v739
    %805 = vmatprep.subr.bf16.mxu0 %v742
    %806 = vmatpush1.bf16.msra.mxu0 %v741
    %807 = vmatprep.subr.bf16.mxu0 %v744
    %808 = vmatpush1.bf16.msra.mxu0 %v743
    %809 = vmatprep.mubr.bf16.mxu0 %v570
    %810 = vmatmul.mubr.bf16.gmra.mrb[0].mxu0 %v569
    %v811 = vpop.f32.mrb[0].mxu0
    %v812 = vadd.f32 %v610, %v811
    %v813 = vpop.f32.mrb[0].mxu0
    %v814 = vadd.f32 %v614, %v813
    %v815 = vpop.f32.mrb[0].mxu0
    %v816 = vadd.f32 %v610, %v815
    %v817 = vpop.f32.mrb[0].mxu0
    %v818 = vadd.f32 %v614, %v817
    %819 = vmatprep.mubr.bf16.mxu0 %v572
    %820 = vmatmul.mubr.bf16.gmra.mrb[0].mxu0 %v571
    %v821 = vpop.f32.mrb[0].mxu0
    %v822 = vadd.f32 %v610, %v821
    %v823 = vpop.f32.mrb[0].mxu0
    %v824 = vadd.f32 %v614, %v823
    %v825 = vpop.f32.mrb[0].mxu0
    %v826 = vadd.f32 %v610, %v825
    %v827 = vpop.f32.mrb[0].mxu0
    %v828 = vadd.f32 %v614, %v827
    %829 = vdwg.mxu0
    %v830 = vmax.f32 %v812, 0.0
    %v831 = vmax.f32 %v814, 0.0
    %v832 = vmax.f32 %v816, 0.0
    %v833 = vmax.f32 %v818, 0.0
    %v834 = vmax.f32 %v822, 0.0
    %v835 = vmax.f32 %v824, 0.0
    %v836 = vmax.f32 %v826, 0.0
    %v837 = vmax.f32 %v828, 0.0
    %v838 = vpack.c.bf16 %v832, %v830
    %v839 = vpack.c.bf16 %v833, %v831
    %v840 = vpack.c.bf16 %v836, %v834
    %v841 = vpack.c.bf16 %v837, %v835
    %v842 = vld [vmem:[#allocation10] sm:$0xf]
    %v843 = vld [vmem:[#allocation10 + $0x4] sm:$0xf]
    %v844 = vld [vmem:[#allocation10 + $0x8] sm:$0xf]
    %v845 = vld [vmem:[#allocation10 + $0xc] sm:$0xf]
    %v846 = vld [vmem:[#allocation10 + $0x10] sm:$0xf]
    %v847 = vld [vmem:[#allocation10 + $0x14] sm:$0xf]
    %v848 = vld [vmem:[#allocation10 + $0x18] sm:$0xf]
    %v849 = vld [vmem:[#allocation10 + $0x1c] sm:$0xf]
    %v850 = vld [vmem:[#allocation10 + $0x20] sm:$0xf]
    %v851 = vld [vmem:[#allocation10 + $0x24] sm:$0xf]
    %v852 = vld [vmem:[#allocation10 + $0x28] sm:$0xf]
    %v853 = vld [vmem:[#allocation10 + $0x2c] sm:$0xf]
    %v854 = vld [vmem:[#allocation10 + $0x30] sm:$0xf]
    %v855 = vld [vmem:[#allocation10 + $0x34] sm:$0xf]
    %v856 = vld [vmem:[#allocation10 + $0x38] sm:$0xf]
    %v857 = vld [vmem:[#allocation10 + $0x3c] sm:$0xf]
    %v858 = vld [vmem:[#allocation10 + $0x40] sm:$0xf]
    %v859 = vld [vmem:[#allocation10 + $0x44] sm:$0xf]
    %v860 = vld [vmem:[#allocation10 + $0x48] sm:$0xf]
    %v861 = vld [vmem:[#allocation10 + $0x4c] sm:$0xf]
    %v862 = vld [vmem:[#allocation10 + $0x50] sm:$0xf]
    %v863 = vld [vmem:[#allocation10 + $0x54] sm:$0xf]
    %v864 = vld [vmem:[#allocation10 + $0x58] sm:$0xf]
    %v865 = vld [vmem:[#allocation10 + $0x5c] sm:$0xf]
    %v866 = vld [vmem:[#allocation10 + $0x60] sm:$0xf]
    %v867 = vld [vmem:[#allocation10 + $0x64] sm:$0xf]
    %v868 = vld [vmem:[#allocation10 + $0x68] sm:$0xf]
    %v869 = vld [vmem:[#allocation10 + $0x6c] sm:$0xf]
    %v870 = vld [vmem:[#allocation10 + $0x70] sm:$0xf]
    %v871 = vld [vmem:[#allocation10 + $0x74] sm:$0xf]
    %v872 = vld [vmem:[#allocation10 + $0x78] sm:$0xf]
    %v873 = vld [vmem:[#allocation10 + $0x7c] sm:$0xf]
    %v874 = vld [vmem:[%s12] sm:$0x1]
    %v876 = vlaneseq
    %v877 = vshrl.u32 %v876, 7
    %v878 = vsub.s32 0, %v877
    %v879 = vrot.slane %v874, %v878
    %v913 = vunpack.c.l.b16 %v842
    %v914 = vunpack.c.l.b16 %v843
    %v915 = vunpack.c.l.b16 %v844
    %v916 = vunpack.c.l.b16 %v845
    %v917 = vunpack.c.l.b16 %v846
    %v918 = vunpack.c.l.b16 %v847
    %v919 = vunpack.c.l.b16 %v848
    %v920 = vunpack.c.l.b16 %v849
    %v921 = vunpack.c.l.b16 %v850
    %v922 = vunpack.c.l.b16 %v851
    %v923 = vunpack.c.l.b16 %v852
    %v924 = vunpack.c.l.b16 %v853
    %v925 = vunpack.c.l.b16 %v854
    %v926 = vunpack.c.l.b16 %v855
    %v927 = vunpack.c.l.b16 %v856
    %v928 = vunpack.c.l.b16 %v857
    %v929 = vunpack.c.l.b16 %v858
    %v930 = vunpack.c.l.b16 %v859
    %v931 = vunpack.c.l.b16 %v860
    %v932 = vunpack.c.l.b16 %v861
    %v933 = vunpack.c.l.b16 %v862
    %v934 = vunpack.c.l.b16 %v863
    %v935 = vunpack.c.l.b16 %v864
    %v936 = vunpack.c.l.b16 %v865
    %v937 = vunpack.c.l.b16 %v866
    %v938 = vunpack.c.l.b16 %v867
    %v939 = vunpack.c.l.b16 %v868
    %v940 = vunpack.c.l.b16 %v869
    %v941 = vunpack.c.l.b16 %v870
    %v942 = vunpack.c.l.b16 %v871
    %v943 = vunpack.c.l.b16 %v872
    %v944 = vunpack.c.l.b16 %v873
    %v945 = vpack.c.b16 %v914, %v913
    %v946 = vpack.c.b16 %v916, %v915
    %v947 = vpack.c.b16 %v918, %v917
    %v948 = vpack.c.b16 %v920, %v919
    %v949 = vpack.c.b16 %v922, %v921
    %v950 = vpack.c.b16 %v924, %v923
    %v951 = vpack.c.b16 %v926, %v925
    %v952 = vpack.c.b16 %v928, %v927
    %v953 = vpack.c.b16 %v930, %v929
    %v954 = vpack.c.b16 %v932, %v931
    %v955 = vpack.c.b16 %v934, %v933
    %v956 = vpack.c.b16 %v936, %v935
    %v957 = vpack.c.b16 %v938, %v937
    %v958 = vpack.c.b16 %v940, %v939
    %v959 = vpack.c.b16 %v942, %v941
    %v960 = vpack.c.b16 %v944, %v943
    %977 = vmatprep.subr.bf16.mxu0 0
    %978 = vmatpush1.bf16.msra.mxu0 %v945
    %979 = vmatprep.subr.bf16.mxu0 0
    %980 = vmatpush1.bf16.msra.mxu0 %v946
    %981 = vmatprep.subr.bf16.mxu0 0
    %982 = vmatpush1.bf16.msra.mxu0 %v947
    %983 = vmatprep.subr.bf16.mxu0 0
    %984 = vmatpush1.bf16.msra.mxu0 %v948
    %985 = vmatprep.subr.bf16.mxu0 0
    %986 = vmatpush1.bf16.msra.mxu0 %v949
    %987 = vmatprep.subr.bf16.mxu0 0
    %988 = vmatpush1.bf16.msra.mxu0 %v950
    %989 = vmatprep.subr.bf16.mxu0 0
    %990 = vmatpush1.bf16.msra.mxu0 %v951
    %991 = vmatprep.subr.bf16.mxu0 0
    %992 = vmatpush1.bf16.msra.mxu0 %v952
    %993 = vmatprep.subr.bf16.mxu0 0
    %994 = vmatpush1.bf16.msra.mxu0 %v953
    %995 = vmatprep.subr.bf16.mxu0 0
    %996 = vmatpush1.bf16.msra.mxu0 %v954
    %997 = vmatprep.subr.bf16.mxu0 0
    %998 = vmatpush1.bf16.msra.mxu0 %v955
    %999 = vmatprep.subr.bf16.mxu0 0
    %1000 = vmatpush1.bf16.msra.mxu0 %v956
    %1001 = vmatprep.subr.bf16.mxu0 0
    %1002 = vmatpush1.bf16.msra.mxu0 %v957
    %1003 = vmatprep.subr.bf16.mxu0 0
    %1004 = vmatpush1.bf16.msra.mxu0 %v958
    %1005 = vmatprep.subr.bf16.mxu0 0
    %1006 = vmatpush1.bf16.msra.mxu0 %v959
    %1007 = vmatprep.subr.bf16.mxu0 0
    %1008 = vmatpush1.bf16.msra.mxu0 %v960
    %1009 = vmatprep.mubr.bf16.mxu0 %v839
    %1010 = vmatmul.mubr.bf16.gmra.mrb[0].mxu0 %v838
    %v1011 = vpop.f32.mrb[0].mxu0
    %v1012 = vadd.f32 %v879, %v1011
    %v1013 = vpop.f32.mrb[0].mxu0
    %v1014 = vpop.f32.mrb[0].mxu0
    %v1015 = vadd.f32 %v879, %v1014
    %v1016 = vpop.f32.mrb[0].mxu0
    %1017 = vmatprep.mubr.bf16.mxu0 %v841
    %1018 = vmatmul.mubr.bf16.gmra.mrb[0].mxu0 %v840
    %v1019 = vpop.f32.mrb[0].mxu0
    %v1020 = vadd.f32 %v879, %v1019
    %v1021 = vpop.f32.mrb[0].mxu0
    %v1022 = vpop.f32.mrb[0].mxu0
    %v1023 = vadd.f32 %v879, %v1022
    %v1024 = vpop.f32.mrb[0].mxu0
    %1025 = vdwg.mxu0
    %v1026 = vmax.f32 %v1012, 0.0
    %v1027 = vmax.f32 %v1015, 0.0
    %v1028 = vmax.f32 %v1020, 0.0
    %v1029 = vmax.f32 %v1023, 0.0
    %v1030 = vld [vmem:[%s13] sm:$0xf]
    %v1031 = vld [vmem:[%s13 + $0x4] sm:$0xf]
    %v1032 = vld [vmem:[%s13 + $0x8] sm:$0xf]
    %v1033 = vld [vmem:[%s13 + $0xc] sm:$0xf]
    %v1034 = vpack.c.bf16 %v1027, %v1026
    %v1035 = vpack.c.bf16 %v1029, %v1028
    %v1040 = vunpack.c.l.b16 %v1030
    %v1041 = vunpack.c.l.b16 %v1031
    %v1042 = vunpack.c.l.b16 %v1032
    %v1043 = vunpack.c.l.b16 %v1033
    %v1044 = vpack.c.b16 %v1041, %v1040
    %v1045 = vpack.c.b16 %v1043, %v1042
    %vm1046 = vcmask 261120
    %v1048 = vsel %vm1046, %v1044, 0
    %v1051 = vsel %vm1046, %v1045, 0
    %1053 = vmatprep.subr.bf16.mxu0 0
    %1054 = vmatpush1.bf16.msra.mxu0 %v1034
    %1055 = vmatprep.subr.bf16.mxu0 0
    %1056 = vmatpush1.bf16.msra.mxu0 %v1035
    %1057 = vmatprep.subr.bf16.mxu0 0
    %1058 = vmatpush1.bf16.msra.mxu0 0
    %1059 = vmatprep.subr.bf16.mxu0 0
    %1060 = vmatpush1.bf16.msra.mxu0 0
    %1061 = vmatprep.subr.bf16.mxu0 0
    %1062 = vmatpush1.bf16.msra.mxu0 0
    %1063 = vmatprep.subr.bf16.mxu0 0
    %1064 = vmatpush1.bf16.msra.mxu0 0
    %1065 = vmatprep.subr.bf16.mxu0 0
    %1066 = vmatpush1.bf16.msra.mxu0 0
    %1067 = vmatprep.subr.bf16.mxu0 0
    %1068 = vmatpush1.bf16.msra.mxu0 0
    %1069 = vmatprep.subr.bf16.mxu0 0
    %1070 = vmatpush1.bf16.msra.mxu0 0
    %1071 = vmatprep.subr.bf16.mxu0 0
    %1072 = vmatpush1.bf16.msra.mxu0 0
    %1073 = vmatprep.subr.bf16.mxu0 0
    %1074 = vmatpush1.bf16.msra.mxu0 0
    %1075 = vmatprep.subr.bf16.mxu0 0
    %1076 = vmatpush1.bf16.msra.mxu0 0
    %1077 = vmatprep.subr.bf16.mxu0 0
    %1078 = vmatpush1.bf16.msra.mxu0 0
    %1079 = vmatprep.subr.bf16.mxu0 0
    %1080 = vmatpush1.bf16.msra.mxu0 0
    %1081 = vmatprep.subr.bf16.mxu0 0
    %1082 = vmatpush1.bf16.msra.mxu0 0
    %1083 = vmatprep.subr.bf16.mxu0 0
    %1084 = vmatpush1.bf16.msra.mxu0 0
    %1085 = vmatprep.mubr.bf16.mxu0 0
    %1086 = vmatmul.mubr.bf16.gmra.mrb[0].mxu0 %v1048
    %v1087 = vpop.f32.mrb[0].mxu0
    %v1088 = vadd.f32 0.0, %v1087
    %v1089 = vpop.f32.mrb[0].mxu0
    %v1090 = vpop.f32.mrb[0].mxu0
    %v1091 = vadd.f32 0.0, %v1090
    %v1092 = vpop.f32.mrb[0].mxu0
    %1093 = vmatprep.mubr.bf16.mxu0 0
    %1094 = vmatmul.mubr.bf16.gmra.mrb[0].mxu0 %v1051
    %v1095 = vpop.f32.mrb[0].mxu0
    %v1096 = vadd.f32 0.0, %v1095
    %v1097 = vpop.f32.mrb[0].mxu0
    %v1098 = vpop.f32.mrb[0].mxu0
    %v1099 = vadd.f32 0.0, %v1098
    %v1100 = vpop.f32.mrb[0].mxu0
    %1101 = vdwg.mxu0
    %v1102 = vmax.f32 %v1088, 0.0
    %v1103 = vmax.f32 %v1091, 0.0
    %v1104 = vmax.f32 %v1096, 0.0
    %v1105 = vmax.f32 %v1099, 0.0
    %v1106 = vpack.c.bf16 %v1103, %v1102
    %v1107 = vpack.c.bf16 %v1105, %v1104
    %1108 = vmatprep.subr.bf16.mxu0 0
    %1109 = vmatpush1.bf16.msra.mxu0 %v1106
    %1110 = vmatprep.subr.bf16.mxu0 0
    %1111 = vmatpush1.bf16.msra.mxu0 %v1107
    %1112 = vmatprep.subr.bf16.mxu0 0
    %1113 = vmatpush1.bf16.msra.mxu0 0
    %1114 = vmatprep.subr.bf16.mxu0 0
    %1115 = vmatpush1.bf16.msra.mxu0 0
    %1116 = vmatprep.subr.bf16.mxu0 0
    %1117 = vmatpush1.bf16.msra.mxu0 0
    %1118 = vmatprep.subr.bf16.mxu0 0
    %1119 = vmatpush1.bf16.msra.mxu0 0
    %1120 = vmatprep.subr.bf16.mxu0 0
    %1121 = vmatpush1.bf16.msra.mxu0 0
    %1122 = vmatprep.subr.bf16.mxu0 0
    %1123 = vmatpush1.bf16.msra.mxu0 0
    %1124 = vmatprep.subr.bf16.mxu0 0
    %1125 = vmatpush1.bf16.msra.mxu0 0
    %1126 = vmatprep.subr.bf16.mxu0 0
    %1127 = vmatpush1.bf16.msra.mxu0 0
    %1128 = vmatprep.subr.bf16.mxu0 0
    %1129 = vmatpush1.bf16.msra.mxu0 0
    %1130 = vmatprep.subr.bf16.mxu0 0
    %1131 = vmatpush1.bf16.msra.mxu0 0
    %1132 = vmatprep.subr.bf16.mxu0 0
    %1133 = vmatpush1.bf16.msra.mxu0 0
    %1134 = vmatprep.subr.bf16.mxu0 0
    %1135 = vmatpush1.bf16.msra.mxu0 0
    %1136 = vmatprep.subr.bf16.mxu0 0
    %1137 = vmatpush1.bf16.msra.mxu0 0
    %1138 = vmatprep.subr.bf16.mxu0 0
    %1139 = vmatpush1.bf16.msra.mxu0 0
    %1140 = vmatprep.mubr.bf16.mxu0 0
    %1141 = vmatmul.mubr.bf16.gmra.mrb[0].mxu0 %v1048
    %v1142 = vpop.f32.mrb[0].mxu0
    %v1143 = vadd.f32 0.0, %v1142
    %v1144 = vpop.f32.mrb[0].mxu0
    %v1145 = vpop.f32.mrb[0].mxu0
    %v1146 = vadd.f32 0.0, %v1145
    %v1147 = vpop.f32.mrb[0].mxu0
    %1148 = vmatprep.mubr.bf16.mxu0 0
    %1149 = vmatmul.mubr.bf16.gmra.mrb[0].mxu0 %v1051
    %v1150 = vpop.f32.mrb[0].mxu0
    %v1151 = vadd.f32 0.0, %v1150
    %v1152 = vpop.f32.mrb[0].mxu0
    %v1153 = vpop.f32.mrb[0].mxu0
    %v1154 = vadd.f32 0.0, %v1153
    %v1155 = vpop.f32.mrb[0].mxu0
    %1156 = vdwg.mxu0
    %v1157 = vmax.f32 %v1143, 0.0
    %v1158 = vmax.f32 %v1146, 0.0
    %v1159 = vmax.f32 %v1151, 0.0
    %v1160 = vmax.f32 %v1154, 0.0
    %1161 = vst [vmem:[#allocation14] sm:$0xff] %v1102
    %1162 = vst [vmem:[#allocation14 + $0x8] sm:$0xff] %v1103
    %1163 = vst [vmem:[#allocation14 + $0x10] sm:$0xff] %v1104
    %1164 = vst [vmem:[#allocation14 + $0x18] sm:$0xff] %v1105
    %1165 = vst [vmem:[#allocation15] sm:$0xff] %v1157
    %1166 = vst [vmem:[#allocation15 + $0x8] sm:$0xff] %v1158
    %1167 = vst [vmem:[#allocation15 + $0x10] sm:$0xff] %v1159
    %1168 = vst [vmem:[#allocation15 + $0x18] sm:$0xff] %v1160
    %v1169 = vpack.c.bf16 %v1158, %v1157
    %v1170 = vpack.c.bf16 %v1160, %v1159
    %v1171 = vld [vmem:[#allocation11] sm:$0xf]
    %v1172 = vld [vmem:[#allocation11 + $0x4] sm:$0xf]
    %v1173 = vld [vmem:[#allocation11 + $0x8] sm:$0xf]
    %v1174 = vld [vmem:[#allocation11 + $0xc] sm:$0xf]
    %v1175 = vld [vmem:[#allocation11 + $0x10] sm:$0xf]
    %v1176 = vld [vmem:[#allocation11 + $0x14] sm:$0xf]
    %v1177 = vld [vmem:[#allocation11 + $0x18] sm:$0xf]
    %v1178 = vld [vmem:[#allocation11 + $0x1c] sm:$0xf]
    %v1179 = vld [vmem:[#allocation11 + $0x20] sm:$0xf]
    %v1180 = vld [vmem:[#allocation11 + $0x24] sm:$0xf]
    %v1181 = vld [vmem:[#allocation11 + $0x28] sm:$0xf]
    %v1182 = vld [vmem:[#allocation11 + $0x2c] sm:$0xf]
    %v1183 = vld [vmem:[#allocation11 + $0x30] sm:$0xf]
    %v1184 = vld [vmem:[#allocation11 + $0x34] sm:$0xf]
    %v1185 = vld [vmem:[#allocation11 + $0x38] sm:$0xf]
    %v1186 = vld [vmem:[#allocation11 + $0x3c] sm:$0xf]
    %v1187 = vld [vmem:[#allocation13] sm:$0x1]
    %v1189 = vlaneseq
    %v1190 = vshrl.u32 %v1189, 7
    %v1191 = vsub.s32 0, %v1190
    %v1192 = vrot.slane %v1187, %v1191
    %v1210 = vunpack.c.l.b16 %v1171
    %v1211 = vunpack.c.l.b16 %v1172
    %v1212 = vunpack.c.l.b16 %v1173
    %v1213 = vunpack.c.l.b16 %v1174
    %v1214 = vunpack.c.l.b16 %v1175
    %v1215 = vunpack.c.l.b16 %v1176
    %v1216 = vunpack.c.l.b16 %v1177
    %v1217 = vunpack.c.l.b16 %v1178
    %v1218 = vunpack.c.l.b16 %v1179
    %v1219 = vunpack.c.l.b16 %v1180
    %v1220 = vunpack.c.l.b16 %v1181
    %v1221 = vunpack.c.l.b16 %v1182
    %v1222 = vunpack.c.l.b16 %v1183
    %v1223 = vunpack.c.l.b16 %v1184
    %v1224 = vunpack.c.l.b16 %v1185
    %v1225 = vunpack.c.l.b16 %v1186
    %v1226 = vpack.c.b16 %v1211, %v1210
    %v1227 = vpack.c.b16 %v1213, %v1212
    %v1228 = vpack.c.b16 %v1215, %v1214
    %v1229 = vpack.c.b16 %v1217, %v1216
    %v1230 = vpack.c.b16 %v1219, %v1218
    %v1231 = vpack.c.b16 %v1221, %v1220
    %v1232 = vpack.c.b16 %v1223, %v1222
    %v1233 = vpack.c.b16 %v1225, %v1224
    %1242 = vmatprep.subr.bf16.mxu0 0
    %1243 = vmatpush1.bf16.msra.mxu0 %v1226
    %1244 = vmatprep.subr.bf16.mxu0 0
    %1245 = vmatpush1.bf16.msra.mxu0 %v1227
    %1246 = vmatprep.subr.bf16.mxu0 0
    %1247 = vmatpush1.bf16.msra.mxu0 %v1228
    %1248 = vmatprep.subr.bf16.mxu0 0
    %1249 = vmatpush1.bf16.msra.mxu0 %v1229
    %1250 = vmatprep.subr.bf16.mxu0 0
    %1251 = vmatpush1.bf16.msra.mxu0 %v1230
    %1252 = vmatprep.subr.bf16.mxu0 0
    %1253 = vmatpush1.bf16.msra.mxu0 %v1231
    %1254 = vmatprep.subr.bf16.mxu0 0
    %1255 = vmatpush1.bf16.msra.mxu0 %v1232
    %1256 = vmatprep.subr.bf16.mxu0 0
    %1257 = vmatpush1.bf16.msra.mxu0 %v1233
    %1258 = vmatprep.subr.bf16.mxu0 0
    %1259 = vmatpush1.bf16.msra.mxu0 0
    %1260 = vmatprep.subr.bf16.mxu0 0
    %1261 = vmatpush1.bf16.msra.mxu0 0
    %1262 = vmatprep.subr.bf16.mxu0 0
    %1263 = vmatpush1.bf16.msra.mxu0 0
    %1264 = vmatprep.subr.bf16.mxu0 0
    %1265 = vmatpush1.bf16.msra.mxu0 0
    %1266 = vmatprep.subr.bf16.mxu0 0
    %1267 = vmatpush1.bf16.msra.mxu0 0
    %1268 = vmatprep.subr.bf16.mxu0 0
    %1269 = vmatpush1.bf16.msra.mxu0 0
    %1270 = vmatprep.subr.bf16.mxu0 0
    %1271 = vmatpush1.bf16.msra.mxu0 0
    %1272 = vmatprep.subr.bf16.mxu0 0
    %1273 = vmatpush1.bf16.msra.mxu0 0
    %1274 = vmatprep.mubr.bf16.mxu0 0
    %1275 = vmatmul.mubr.bf16.gmra.mrb[0].mxu0 %v1169
    %v1276 = vpop.f32.mrb[0].mxu0
    %v1277 = vadd.f32 %v1192, %v1276
    %v1278 = vpop.f32.mrb[0].mxu0
    %v1279 = vpop.f32.mrb[0].mxu0
    %v1280 = vadd.f32 %v1192, %v1279
    %v1281 = vpop.f32.mrb[0].mxu0
    %1282 = vmatprep.mubr.bf16.mxu0 0
    %1283 = vmatmul.mubr.bf16.gmra.mrb[0].mxu0 %v1170
    %v1284 = vpop.f32.mrb[0].mxu0
    %v1285 = vadd.f32 %v1192, %v1284
    %v1286 = vpop.f32.mrb[0].mxu0
    %v1287 = vpop.f32.mrb[0].mxu0
    %v1288 = vadd.f32 %v1192, %v1287
    %v1289 = vpop.f32.mrb[0].mxu0
    %1290 = vdwg.mxu0
    %1291 = vst [vmem:[%s18] sm:$0xff] %v1277
    %1292 = vst [vmem:[%s18 + $0x8] sm:$0xff] %v1280
    %1293 = vst [vmem:[%s18 + $0x10] sm:$0xff] %v1285
    %1294 = vst [vmem:[%s18 + $0x18] sm:$0xff] %v1288
    // Predicated region
    $region94: #{hspgcn_forward.1} parent=1 // pred_check
      _
    $region95: #{hspgcn_forward.1} parent=1 // pred_check_branch
      %1296 = sbr.rel (0) target = $region97
    $region96: #{hspgcn_forward.1} parent=1 // pred_region
      %s1298 = ssub.s32 512, 512
      %1299 = vsyncadd [#allocation4], %s1298
      %s1300 = sshll.u32 [#allocation14], 4
      %s1301 = int_to_ptr.vmem [resolvable:$true] %s1300
      %1306 = dma.vmem_to_hbm [thread:$0]  %s1301, 512, %s16, [#allocation4], 128, 128, 8
    $region97: #{hspgcn_forward.1} parent=1 // pred_fallthru
      _
    // Predicated region
    $region98: #{hspgcn_forward.1} parent=1 // pred_check
      _
    $region99: #{hspgcn_forward.1} parent=1 // pred_check_branch
      %1308 = sbr.rel (0) target = $region101
    $region100: #{hspgcn_forward.1} parent=1 // pred_region
      %s1310 = ssub.s32 512, 512
      %1311 = vsyncadd [#allocation16], %s1310
      %s1312 = sshll.u32 [#allocation15], 4
      %s1313 = int_to_ptr.vmem [resolvable:$true] %s1312
      %1318 = dma.vmem_to_hbm [thread:$0]  %s1313, 512, %s17, [#allocation16], 128, 128, 8
    $region101: #{hspgcn_forward.1} parent=1 // pred_fallthru
      _
    // Predicated region
    $region102: #{hspgcn_forward.1} parent=1 // pred_check
      _
    $region103: #{hspgcn_forward.1} parent=1 // pred_check_branch
      %1320 = sbr.rel (0) target = $region105
    $region104: #{hspgcn_forward.1} parent=1 // pred_region
      _
    $region105: #{hspgcn_forward.1} parent=1 // pred_fallthru
      _
    // Predicated region
    $region106: #{hspgcn_forward.1} parent=1 // pred_check
      _
    $region107: #{hspgcn_forward.1} parent=1 // pred_check_branch
      %1322 = sbr.rel (0) target = $region109
    $region108: #{hspgcn_forward.1} parent=1 // pred_region
      %1323 = dma.done [#allocation4], 512
    $region109: #{hspgcn_forward.1} parent=1 // pred_fallthru
      _
    // Predicated region
    $region110: #{hspgcn_forward.1} parent=1 // pred_check
      _
    $region111: #{hspgcn_forward.1} parent=1 // pred_check_branch
      %1325 = sbr.rel (0) target = $region113
    $region112: #{hspgcn_forward.1} parent=1 // pred_region
      %1326 = dma.done [#allocation16], 512
    $region113: #{hspgcn_forward.1} parent=1 // pred_fallthru
      _
    // Predicated region
    $region114: #{hspgcn_forward.1} parent=1 // pred_check
      _
    $region115: #{hspgcn_forward.1} parent=1 // pred_check_branch
      %1328 = sbr.rel (0) target = $region117
    $region116: #{hspgcn_forward.1} parent=1 // pred_region
      _
    $region117: #{hspgcn_forward.1} parent=1 // pred_fallthru
      _
    %1329 = vsyncpa [#allocation3], 1
    %1330 = vsyncpa [#allocation6], 1
    %1331 = vsyncpa [#allocation9], 1
    %1332 = vsyncpa [#allocation12], 1
    %1333 = vsyncpa [#allocation4], 1
    %1334 = vsyncpa [#allocation16], 1

</llo_original>
